<compile_context>
chip_gen: v6e
topology: v6e:2x2x1
jax: 0.10.0
libtpu: 0.0.40
codegen_flags: <defaults>
</compile_context>

<pallas_src>
import functools

import jax
import jax.numpy as jnp
import numpy as np
from jax.experimental import pallas as pl
from jax.experimental.pallas import tpu as pltpu


# ----------------------------------------------------------------------------
# Kernel: full MixConv2d forward for `bs` samples per grid step.
# ----------------------------------------------------------------------------
def _mixconv_kernel(x_ref, w_ref, o_ref, xext_ref, xmask_ref, patch_ref, *,
                    H, W, margin, shift_list, units, bias_row, bs, cin, dtype):
    HW = H * W
    extw = HW + 2 * margin

    # Zero only the two margin strips: the interior is fully overwritten per
    # sample and the masked copies are rewritten full-width per sample.
    # NOTE: done unconditionally every step (NOT under pl.when(pid == 0)) --
    # with a "parallel" grid axis each TensorCore owns its own scratch.
    xext_ref[:, :margin] = jnp.zeros((cin, margin), dtype)
    xext_ref[:, margin + HW:] = jnp.zeros((cin, margin), dtype)

    # Bias folded into the matmul: constant-ones patch row (written once per
    # step, shared by all samples' column blocks).
    patch_ref[bias_row:bias_row + 1, :] = jnp.ones((1, bs * HW), dtype)

    # Column-validity masks in *source* (extended-buffer) coordinates.  The
    # mask position depends only on dkw (dkh*W == 0 mod W), so one mask per
    # distinct horizontal shift serves every tap with that dkw.
    pos = jax.lax.broadcasted_iota(jnp.int32, (1, extw), dimension=1)
    masks = {}
    for dkw in shift_list:
        ow = jnp.mod(pos - margin - dkw, W)
        masks[dkw] = (ow + dkw >= 0) & (ow + dkw < W)

    for b in range(bs):
        col0 = b * HW

        # Stage sample b with zero lane margins (margin is a multiple of 128,
        # so this store is lane-aligned; vertical tap overflow lands in the
        # zero margins automatically).
        xext_ref[:, margin:margin + HW] = x_ref[b]
        xraw = xext_ref[...]

        # Pre-masked copies: one VPU select per distinct dkw per sample
        # instead of one select per tap.  Margins stay zero.
        for si, dkw in enumerate(shift_list):
            xmask_ref[si * cin:(si + 1) * cin, :] = jnp.where(
                masks[dkw], xraw, jnp.zeros_like(xraw))

        # im2col: each store unit packs whole taps into one 8-sublane-row,
        # lane-aligned (rows, HW) store (cpg=4 -> two taps per unmasked vst).
        for row0, unit_taps in units:
            slabs = []
            for ch0, cpg, dkh, dkw in unit_taps:
                off = margin + dkh * W + dkw
                if dkw == 0:
                    slabs.append(xext_ref[ch0:ch0 + cpg, off:off + HW])
                else:
                    si = shift_list.index(dkw)
                    r0 = si * cin + ch0
                    slabs.append(xmask_ref[r0:r0 + cpg, off:off + HW])
            unit = slabs[0] if len(slabs) == 1 else jnp.concatenate(slabs, axis=0)
            patch_ref[row0:row0 + unit.shape[0], col0:col0 + HW] = unit

    # ONE MXU matmul per grid step covers all bs samples, both branches, all
    # groups and the bias (block-diagonal flattened weights + bias column).
    w = w_ref[...]
    acc = jnp.dot(w, patch_ref[...], preferred_element_type=jnp.float32)

    for b in range(bs):
        o_ref[b, :, :] = acc[:, b * HW:(b + 1) * HW].astype(o_ref.dtype)


# ----------------------------------------------------------------------------
# One-time parameter prep: static im2col plan + packed block-diagonal weights.
# ----------------------------------------------------------------------------
def build_mixconv_plan(x_shape, params, *, padding, dilation, groups):
    _, Cin, H, W = x_shape
    HW = H * W
    c1 = Cin // 2
    branch_cfgs = (
        ("w3", 0, padding, groups // 2),
        ("w5", c1, padding + 1, groups - groups // 2),
    )

    taps = []      # (ch0, cpg, dkh, dkw) in patch-row order
    wplace = []    # (wname, group_j, col0, out_row0, cout_pg, cin_pg, kh, kw)
    row = 0
    out0 = 0
    for wname, ch_start, pad, g in branch_cfgs:
        cout_b, cin_pg, kh_sz, kw_sz = params[wname].shape
        cout_pg = cout_b // g
        # TODO(synk): only stride=1 'same' convolutions are supported here.
        assert 2 * pad == dilation * (kh_sz - 1) and 2 * pad == dilation * (kw_sz - 1)
        for j in range(g):
            col0 = row
            ch0 = ch_start + j * cin_pg
            for kh in range(kh_sz):
                for kw in range(kw_sz):
                    taps.append((ch0, cin_pg,
                                 kh * dilation - pad, kw * dilation - pad))
                    row += cin_pg
            wplace.append((wname, j, col0, out0 + j * cout_pg, cout_pg, cin_pg,
                           kh_sz, kw_sz))
        out0 += cout_b

    bias_row = row
    k_total = row + 1                 # +1: constant-ones row for the bias
    cout_total = out0

    # Store units: greedily pack whole taps into 8-row units so im2col stores
    # are full-tile, sublane-aligned vst (for cpg=4 that is two taps each).
    units = []
    i, r = 0, 0
    while i < len(taps):
        unit = [taps[i]]
        rows = taps[i][1]
        i += 1
        while i < len(taps) and rows < 8 and rows + taps[i][1] <= 8:
            unit.append(taps[i])
            rows += taps[i][1]
            i += 1
        units.append((r, tuple(unit)))
        r += rows

    shift_list = tuple(sorted({t[3] for t in taps if t[3] != 0}))
    max_abs = max(abs(dkh * W + dkw) for _, _, dkh, dkw in taps)
    margin = ((max_abs + 127) // 128) * 128   # multiple of 128 -> aligned staging

    return dict(H=H, W=W, HW=HW, Cin=Cin, cout_total=cout_total,
                k_total=k_total, bias_row=bias_row, units=tuple(units),
                shift_list=shift_list, margin=margin, wplace=tuple(wplace))


def pack_mixconv_weights(params, plan, dtype=jnp.float32):
    """Build the (Cout_total, K_total) block-diagonal weight (bias folded in)."""
    w = jnp.zeros((plan["cout_total"], plan["k_total"]), jnp.float32)
    for wname, j, col0, out_row0, cout_pg, cin_pg, kh_sz, kw_sz in plan["wplace"]:
        wt = params[wname].astype(jnp.float32)
        blk = wt[j * cout_pg:(j + 1) * cout_pg]                 # (o, i, kh, kw)
        blk = jnp.transpose(blk, (0, 2, 3, 1)).reshape(cout_pg,
                                                       kh_sz * kw_sz * cin_pg)
        w = w.at[out_row0:out_row0 + cout_pg, col0:col0 + blk.shape[1]].set(blk)
    bias = jnp.concatenate([params["b3"], params["b5"]]).astype(jnp.float32)
    w = w.at[:, plan["bias_row"]].set(bias)
    return w.astype(dtype)


# ----------------------------------------------------------------------------
# Forward wrapper.
# ----------------------------------------------------------------------------
def mixconv2d_forward(x, w_cat, *, plan):
    """x: (N, Cin, H, W) NCHW -> (N, Cout, H, W)."""
    N, Cin, H, W = x.shape
    HW = H * W
    assert Cin == plan["Cin"] and H == plan["H"] and W == plan["W"]
    dtype = x.dtype
    cout_total = plan["cout_total"]
    k_total = plan["k_total"]
    margin = plan["margin"]
    extw = HW + 2 * margin
    n_shift = max(1, len(plan["shift_list"]))
    itemsize = jnp.dtype(dtype).itemsize

    def step_bytes(bs):
        scratch = (Cin * extw * (1 + n_shift) + k_total * bs * HW) * itemsize
        io = 2 * bs * (Cin + cout_total) * HW * itemsize \
            + 2 * cout_total * k_total * itemsize
        return scratch + io

    # Samples per grid step: keep >= 2 "parallel" grid steps when N >= 2 so
    # both v7x TensorCores get work, amortize per-step overhead otherwise;
    # bounded by a conservative VMEM budget (safe for v7x's 64 MiB).
    budget = 40 * 2 ** 20
    bs = 1
    for cand in range(max(1, min(8, N // 2)), 0, -1):
        if N % cand == 0 and step_bytes(cand) <= budget:
            bs = cand
            break

    kernel = functools.partial(
        _mixconv_kernel, H=H, W=W, margin=margin,
        shift_list=plan["shift_list"], units=plan["units"],
        bias_row=plan["bias_row"], bs=bs, cin=Cin, dtype=dtype)

    vmem_limit = int(min(64 * 2 ** 20, max(2 * step_bytes(bs) + (4 << 20),
                                           16 << 20)))

    out = pl.pallas_call(
        kernel,
        out_shape=jax.ShapeDtypeStruct((N, cout_total, HW), dtype),
        grid=(N // bs,),
        in_specs=[
            pl.BlockSpec((bs, Cin, HW), lambda i: (i, 0, 0)),
            # Constant index map: weights are DMA'd once, never re-fetched.
            pl.BlockSpec((cout_total, k_total), lambda i: (0, 0)),
        ],
        out_specs=pl.BlockSpec((bs, cout_total, HW), lambda i: (i, 0, 0)),
        scratch_shapes=[
            pltpu.VMEM((Cin, extw), dtype),              # staged sample + margins
            pltpu.VMEM((n_shift * Cin, extw), dtype),    # pre-masked dkw copies
            pltpu.VMEM((k_total, bs * HW), dtype),       # im2col patches (+ ones row)
        ],
        compiler_params=pltpu.CompilerParams(
            dimension_semantics=("parallel",),
            vmem_limit_bytes=vmem_limit),
    )(x.reshape(N, Cin, HW), w_cat.astype(dtype))

    return out.reshape(N, cout_total, H, W)


# ----------------------------------------------------------------------------
# Pure-JAX reference (for correctness check).
# ----------------------------------------------------------------------------
def _ref_conv(x, w, b, padding, dilation, groups):
    y = jax.lax.conv_general_dilated(
        x, w, window_strides=(1, 1),
        padding=[(padding, padding), (padding, padding)],
        rhs_dilation=(dilation, dilation),
        dimension_numbers=("NCHW", "OIHW", "NCHW"),
        feature_group_count=groups)
    return y + b[None, :, None, None]


def mixconv2d_ref(x, params, *, padding, dilation, groups):
    cin = x.shape[1]
    c1 = cin // 2
    x1, x2 = x[:, :c1], x[:, c1:]
    y1 = _ref_conv(x1, params["w3"], params["b3"], padding, dilation, groups // 2)
    y2 = _ref_conv(x2, params["w5"], params["b5"], padding + 1, dilation,
                   groups - groups // 2)
    return jnp.concatenate([y1, y2], axis=1)


if __name__ == "__main__":
    # MixConv2d(in=8, out=8, k=3, stride=1, pad=1, dil=1, groups=2, bias=True)
    # (the HRViT MixCFN configuration).
    in_channels, out_channels = 8, 8
    kernel_size, stride, padding, dilation, groups = 3, 1, 1, 1, 2
    N, H, W = 2, 16, 16

    key = jax.random.PRNGKey(0)
    kx, kw3, kb3, kw5, kb5 = jax.random.split(key, 5)

    c_in3, c_out3 = in_channels // 2, out_channels // 2
    c_in5, c_out5 = in_channels - in_channels // 2, out_channels - out_channels // 2
    g3, g5 = groups // 2, groups - groups // 2

    params = {
        "w3": 0.1 * jax.random.normal(
            kw3, (c_out3, c_in3 // g3, kernel_size, kernel_size), jnp.float32),
        "b3": 0.1 * jax.random.normal(kb3, (c_out3,), jnp.float32),
        "w5": 0.1 * jax.random.normal(
            kw5, (c_out5, c_in5 // g5, kernel_size + 2, kernel_size + 2),
            jnp.float32),
        "b5": 0.1 * jax.random.normal(kb5, (c_out5,), jnp.float32),
    }

    x = jax.random.normal(kx, (N, in_channels, H, W), jnp.float32)

    # One-time parameter prep (outside jit): static plan + packed weights.
    plan = build_mixconv_plan(x.shape, params, padding=padding,
                              dilation=dilation, groups=groups)
    w_cat = pack_mixconv_weights(params, plan, dtype=x.dtype)

    fwd = jax.jit(functools.partial(mixconv2d_forward, plan=plan))
    y = fwd(x, w_cat)
    y = jax.block_until_ready(y)

    y_ref = mixconv2d_ref(x, params, padding=padding, dilation=dilation,
                          groups=groups)
    np.testing.assert_allclose(np.asarray(y), np.asarray(y_ref),
                               rtol=1e-4, atol=1e-4)
    assert y.shape == (N, out_channels, H, W)

    print("KERNEL_OK")
</pallas_src>

<mosaic_0001>
module attributes {stable_mosaic.version = 11 : i64} {
  func.func @_mixconv_kernel(%arg0: i32, %arg1: memref<1x8x256xf32, #tpu.memory_space<vmem>>, %arg2: memref<8x137xf32, #tpu.memory_space<vmem>>, %arg3: memref<1x8x256xf32, #tpu.memory_space<vmem>>, %arg4: memref<8x512xf32, #tpu.memory_space<vmem>>, %arg5: memref<32x512xf32, #tpu.memory_space<vmem>>, %arg6: memref<137x256xf32, #tpu.memory_space<vmem>>) attributes {dimension_semantics = [#tpu.dimension_semantics<parallel>], iteration_bounds = array<i64: 2>, scalar_prefetch = 0 : i64, scratch_operands = 3 : i64, tpu.core_type = #tpu.core_type<tc>, window_params = [{transform_indices = @transform_0, window_bounds = array<i64: 1, 8, 256>}, {pipeline_mode = #tpu.pipeline_mode<synchronous>, transform_indices = @transform_1, window_bounds = array<i64: 8, 137>}, {transform_indices = @transform_2, window_bounds = array<i64: 1, 8, 256>}]} {
    %cst = arith.constant 0.000000e+00 : f32
    %0 = vector.broadcast %cst : f32 to vector<8x128xf32>
    %c0 = arith.constant 0 : index
    %c0_0 = arith.constant 0 : index
    %1 = vector.load %arg4[%c0, %c0_0] : memref<8x512xf32, #tpu.memory_space<vmem>>, vector<8x128xf32>
    tpu.vector_store %arg4[%c0, %c0_0], %0 {strides = array<i32>} : memref<8x512xf32, #tpu.memory_space<vmem>>, vector<8x128xf32>,
    %cst_1 = arith.constant 0.000000e+00 : f32
    %2 = vector.broadcast %cst_1 : f32 to vector<8x128xf32>
    %c0_2 = arith.constant 0 : index
    %c384 = arith.constant 384 : index
    %3 = vector.load %arg4[%c0_2, %c384] : memref<8x512xf32, #tpu.memory_space<vmem>>, vector<8x128xf32>
    tpu.vector_store %arg4[%c0_2, %c384], %2 {strides = array<i32>} : memref<8x512xf32, #tpu.memory_space<vmem>>, vector<8x128xf32>,
    %cst_3 = arith.constant 1.000000e+00 : f32
    %4 = vector.broadcast %cst_3 : f32 to vector<1x256xf32>
    %c136 = arith.constant 136 : index
    %c0_4 = arith.constant 0 : index
    %5 = vector.load %arg6[%c136, %c0_4] : memref<137x256xf32, #tpu.memory_space<vmem>>, vector<1x256xf32>
    tpu.vector_store %arg6[%c136, %c0_4], %4 {strides = array<i32>} : memref<137x256xf32, #tpu.memory_space<vmem>>, vector<1x256xf32>,
    %6 = tpu.iota {dimensions = array<i32: 1>} : vector<1x512xi32>
    %c128_i32 = arith.constant 128 : i32
    %7 = vector.broadcast %c128_i32 : i32 to vector<1x512xi32>
    %8 = arith.subi %6, %7 : vector<1x512xi32>
    %c-2_i32 = arith.constant -2 : i32
    %9 = vector.broadcast %c-2_i32 : i32 to vector<1x512xi32>
    %10 = arith.subi %8, %9 : vector<1x512xi32>
    %c16_i32 = arith.constant 16 : i32
    %c0_i32 = arith.constant 0 : i32
    %11 = arith.cmpi eq, %c16_i32, %c0_i32 : i32
    %c1_i32 = arith.constant 1 : i32
    %12 = arith.select %11, %c1_i32, %c16_i32 : i32
    %13 = vector.broadcast %12 : i32 to vector<1x512xi32>
    %14 = arith.remsi %10, %13 : vector<1x512xi32>
    %c0_i32_5 = arith.constant 0 : i32
    %15 = vector.broadcast %c0_i32_5 : i32 to vector<1x512xi32>
    %16 = arith.cmpi ne, %14, %15 : vector<1x512xi32>
    %c0_i32_6 = arith.constant 0 : i32
    %17 = vector.broadcast %c0_i32_6 : i32 to vector<1x512xi32>
    %18 = arith.cmpi slt, %14, %17 : vector<1x512xi32>
    %c0_i32_7 = arith.constant 0 : i32
    %19 = arith.cmpi slt, %12, %c0_i32_7 : i32
    %20 = vector.broadcast %19 : i1 to vector<1x512xi1>
    %21 = vector.broadcast %20 : vector<1x512xi1> to vector<1x512xi1>
    %22 = arith.xori %18, %21 : vector<1x512xi1>
    %23 = arith.andi %22, %16 : vector<1x512xi1>
    %24 = vector.broadcast %12 : i32 to vector<1x512xi32>
    %25 = arith.addi %14, %24 : vector<1x512xi32>
    %26 = arith.select %23, %25, %14 : vector<1x512xi1>, vector<1x512xi32>
    %c-2_i32_8 = arith.constant -2 : i32
    %27 = vector.broadcast %c-2_i32_8 : i32 to vector<1x512xi32>
    %28 = arith.addi %26, %27 : vector<1x512xi32>
    %c0_i32_9 = arith.constant 0 : i32
    %29 = vector.broadcast %c0_i32_9 : i32 to vector<1x512xi32>
    %30 = arith.cmpi sge, %28, %29 : vector<1x512xi32>
    %c-2_i32_10 = arith.constant -2 : i32
    %31 = vector.broadcast %c-2_i32_10 : i32 to vector<1x512xi32>
    %32 = arith.addi %26, %31 : vector<1x512xi32>
    %c16_i32_11 = arith.constant 16 : i32
    %33 = vector.broadcast %c16_i32_11 : i32 to vector<1x512xi32>
    %34 = arith.cmpi slt, %32, %33 : vector<1x512xi32>
    %35 = arith.andi %30, %34 : vector<1x512xi1>
    %c128_i32_12 = arith.constant 128 : i32
    %36 = vector.broadcast %c128_i32_12 : i32 to vector<1x512xi32>
    %37 = arith.subi %6, %36 : vector<1x512xi32>
    %c-1_i32 = arith.constant -1 : i32
    %38 = vector.broadcast %c-1_i32 : i32 to vector<1x512xi32>
    %39 = arith.subi %37, %38 : vector<1x512xi32>
    %c16_i32_13 = arith.constant 16 : i32
    %c0_i32_14 = arith.constant 0 : i32
    %40 = arith.cmpi eq, %c16_i32_13, %c0_i32_14 : i32
    %c1_i32_15 = arith.constant 1 : i32
    %41 = arith.select %40, %c1_i32_15, %c16_i32_13 : i32
    %42 = vector.broadcast %41 : i32 to vector<1x512xi32>
    %43 = arith.remsi %39, %42 : vector<1x512xi32>
    %c0_i32_16 = arith.constant 0 : i32
    %44 = vector.broadcast %c0_i32_16 : i32 to vector<1x512xi32>
    %45 = arith.cmpi ne, %43, %44 : vector<1x512xi32>
    %c0_i32_17 = arith.constant 0 : i32
    %46 = vector.broadcast %c0_i32_17 : i32 to vector<1x512xi32>
    %47 = arith.cmpi slt, %43, %46 : vector<1x512xi32>
    %c0_i32_18 = arith.constant 0 : i32
    %48 = arith.cmpi slt, %41, %c0_i32_18 : i32
    %49 = vector.broadcast %48 : i1 to vector<1x512xi1>
    %50 = vector.broadcast %49 : vector<1x512xi1> to vector<1x512xi1>
    %51 = arith.xori %47, %50 : vector<1x512xi1>
    %52 = arith.andi %51, %45 : vector<1x512xi1>
    %53 = vector.broadcast %41 : i32 to vector<1x512xi32>
    %54 = arith.addi %43, %53 : vector<1x512xi32>
    %55 = arith.select %52, %54, %43 : vector<1x512xi1>, vector<1x512xi32>
    %c-1_i32_19 = arith.constant -1 : i32
    %56 = vector.broadcast %c-1_i32_19 : i32 to vector<1x512xi32>
    %57 = arith.addi %55, %56 : vector<1x512xi32>
    %c0_i32_20 = arith.constant 0 : i32
    %58 = vector.broadcast %c0_i32_20 : i32 to vector<1x512xi32>
    %59 = arith.cmpi sge, %57, %58 : vector<1x512xi32>
    %c-1_i32_21 = arith.constant -1 : i32
    %60 = vector.broadcast %c-1_i32_21 : i32 to vector<1x512xi32>
    %61 = arith.addi %55, %60 : vector<1x512xi32>
    %c16_i32_22 = arith.constant 16 : i32
    %62 = vector.broadcast %c16_i32_22 : i32 to vector<1x512xi32>
    %63 = arith.cmpi slt, %61, %62 : vector<1x512xi32>
    %64 = arith.andi %59, %63 : vector<1x512xi1>
    %c128_i32_23 = arith.constant 128 : i32
    %65 = vector.broadcast %c128_i32_23 : i32 to vector<1x512xi32>
    %66 = arith.subi %6, %65 : vector<1x512xi32>
    %c1_i32_24 = arith.constant 1 : i32
    %67 = vector.broadcast %c1_i32_24 : i32 to vector<1x512xi32>
    %68 = arith.subi %66, %67 : vector<1x512xi32>
    %c16_i32_25 = arith.constant 16 : i32
    %c0_i32_26 = arith.constant 0 : i32
    %69 = arith.cmpi eq, %c16_i32_25, %c0_i32_26 : i32
    %c1_i32_27 = arith.constant 1 : i32
    %70 = arith.select %69, %c1_i32_27, %c16_i32_25 : i32
    %71 = vector.broadcast %70 : i32 to vector<1x512xi32>
    %72 = arith.remsi %68, %71 : vector<1x512xi32>
    %c0_i32_28 = arith.constant 0 : i32
    %73 = vector.broadcast %c0_i32_28 : i32 to vector<1x512xi32>
    %74 = arith.cmpi ne, %72, %73 : vector<1x512xi32>
    %c0_i32_29 = arith.constant 0 : i32
    %75 = vector.broadcast %c0_i32_29 : i32 to vector<1x512xi32>
    %76 = arith.cmpi slt, %72, %75 : vector<1x512xi32>
    %c0_i32_30 = arith.constant 0 : i32
    %77 = arith.cmpi slt, %70, %c0_i32_30 : i32
    %78 = vector.broadcast %77 : i1 to vector<1x512xi1>
    %79 = vector.broadcast %78 : vector<1x512xi1> to vector<1x512xi1>
    %80 = arith.xori %76, %79 : vector<1x512xi1>
    %81 = arith.andi %80, %74 : vector<1x512xi1>
    %82 = vector.broadcast %70 : i32 to vector<1x512xi32>
    %83 = arith.addi %72, %82 : vector<1x512xi32>
    %84 = arith.select %81, %83, %72 : vector<1x512xi1>, vector<1x512xi32>
    %c1_i32_31 = arith.constant 1 : i32
    %85 = vector.broadcast %c1_i32_31 : i32 to vector<1x512xi32>
    %86 = arith.addi %84, %85 : vector<1x512xi32>
    %c0_i32_32 = arith.constant 0 : i32
    %87 = vector.broadcast %c0_i32_32 : i32 to vector<1x512xi32>
    %88 = arith.cmpi sge, %86, %87 : vector<1x512xi32>
    %c1_i32_33 = arith.constant 1 : i32
    %89 = vector.broadcast %c1_i32_33 : i32 to vector<1x512xi32>
    %90 = arith.addi %84, %89 : vector<1x512xi32>
    %c16_i32_34 = arith.constant 16 : i32
    %91 = vector.broadcast %c16_i32_34 : i32 to vector<1x512xi32>
    %92 = arith.cmpi slt, %90, %91 : vector<1x512xi32>
    %93 = arith.andi %88, %92 : vector<1x512xi1>
    %c128_i32_35 = arith.constant 128 : i32
    %94 = vector.broadcast %c128_i32_35 : i32 to vector<1x512xi32>
    %95 = arith.subi %6, %94 : vector<1x512xi32>
    %c2_i32 = arith.constant 2 : i32
    %96 = vector.broadcast %c2_i32 : i32 to vector<1x512xi32>
    %97 = arith.subi %95, %96 : vector<1x512xi32>
    %c16_i32_36 = arith.constant 16 : i32
    %c0_i32_37 = arith.constant 0 : i32
    %98 = arith.cmpi eq, %c16_i32_36, %c0_i32_37 : i32
    %c1_i32_38 = arith.constant 1 : i32
    %99 = arith.select %98, %c1_i32_38, %c16_i32_36 : i32
    %100 = vector.broadcast %99 : i32 to vector<1x512xi32>
    %101 = arith.remsi %97, %100 : vector<1x512xi32>
    %c0_i32_39 = arith.constant 0 : i32
    %102 = vector.broadcast %c0_i32_39 : i32 to vector<1x512xi32>
    %103 = arith.cmpi ne, %101, %102 : vector<1x512xi32>
    %c0_i32_40 = arith.constant 0 : i32
    %104 = vector.broadcast %c0_i32_40 : i32 to vector<1x512xi32>
    %105 = arith.cmpi slt, %101, %104 : vector<1x512xi32>
    %c0_i32_41 = arith.constant 0 : i32
    %106 = arith.cmpi slt, %99, %c0_i32_41 : i32
    %107 = vector.broadcast %106 : i1 to vector<1x512xi1>
    %108 = vector.broadcast %107 : vector<1x512xi1> to vector<1x512xi1>
    %109 = arith.xori %105, %108 : vector<1x512xi1>
    %110 = arith.andi %109, %103 : vector<1x512xi1>
    %111 = vector.broadcast %99 : i32 to vector<1x512xi32>
    %112 = arith.addi %101, %111 : vector<1x512xi32>
    %113 = arith.select %110, %112, %101 : vector<1x512xi1>, vector<1x512xi32>
    %c2_i32_42 = arith.constant 2 : i32
    %114 = vector.broadcast %c2_i32_42 : i32 to vector<1x512xi32>
    %115 = arith.addi %113, %114 : vector<1x512xi32>
    %c0_i32_43 = arith.constant 0 : i32
    %116 = vector.broadcast %c0_i32_43 : i32 to vector<1x512xi32>
    %117 = arith.cmpi sge, %115, %116 : vector<1x512xi32>
    %c2_i32_44 = arith.constant 2 : i32
    %118 = vector.broadcast %c2_i32_44 : i32 to vector<1x512xi32>
    %119 = arith.addi %113, %118 : vector<1x512xi32>
    %c16_i32_45 = arith.constant 16 : i32
    %120 = vector.broadcast %c16_i32_45 : i32 to vector<1x512xi32>
    %121 = arith.cmpi slt, %119, %120 : vector<1x512xi32>
    %122 = arith.andi %117, %121 : vector<1x512xi1>
    %c0_46 = arith.constant 0 : index
    %c0_47 = arith.constant 0 : index
    %c0_48 = arith.constant 0 : index
    %123 = vector.load %arg1[%c0_46, %c0_47, %c0_48] : memref<1x8x256xf32, #tpu.memory_space<vmem>>, vector<1x8x256xf32>
    %124 = vector.shape_cast %123 : vector<1x8x256xf32> to vector<8x256xf32>
    %c0_49 = arith.constant 0 : index
    %c128 = arith.constant 128 : index
    %125 = vector.load %arg4[%c0_49, %c128] : memref<8x512xf32, #tpu.memory_space<vmem>>, vector<8x256xf32>
    tpu.vector_store %arg4[%c0_49, %c128], %124 {strides = array<i32>} : memref<8x512xf32, #tpu.memory_space<vmem>>, vector<8x256xf32>,
    %c0_50 = arith.constant 0 : index
    %c0_51 = arith.constant 0 : index
    %126 = vector.load %arg4[%c0_50, %c0_51] : memref<8x512xf32, #tpu.memory_space<vmem>>, vector<8x512xf32>
    %cst_52 = arith.constant 0.000000e+00 : f32
    %127 = vector.broadcast %cst_52 : f32 to vector<8x512xf32>
    %128 = vector.shape_cast %35 : vector<1x512xi1> to vector<1x512xi1>
    %129 = vector.broadcast %128 : vector<1x512xi1> to vector<8x512xi1>
    %130 = arith.select %129, %126, %127 : vector<8x512xi1>, vector<8x512xf32>
    %c0_53 = arith.constant 0 : index
    %c0_54 = arith.constant 0 : index
    %131 = vector.load %arg5[%c0_53, %c0_54] : memref<32x512xf32, #tpu.memory_space<vmem>>, vector<8x512xf32>
    tpu.vector_store %arg5[%c0_53, %c0_54], %130 {strides = array<i32>} : memref<32x512xf32, #tpu.memory_space<vmem>>, vector<8x512xf32>,
    %cst_55 = arith.constant 0.000000e+00 : f32
    %132 = vector.broadcast %cst_55 : f32 to vector<8x512xf32>
    %133 = vector.shape_cast %64 : vector<1x512xi1> to vector<1x512xi1>
    %134 = vector.broadcast %133 : vector<1x512xi1> to vector<8x512xi1>
    %135 = arith.select %134, %126, %132 : vector<8x512xi1>, vector<8x512xf32>
    %c8 = arith.constant 8 : index
    %c0_56 = arith.constant 0 : index
    %136 = vector.load %arg5[%c8, %c0_56] : memref<32x512xf32, #tpu.memory_space<vmem>>, vector<8x512xf32>
    tpu.vector_store %arg5[%c8, %c0_56], %135 {strides = array<i32>} : memref<32x512xf32, #tpu.memory_space<vmem>>, vector<8x512xf32>,
    %cst_57 = arith.constant 0.000000e+00 : f32
    %137 = vector.broadcast %cst_57 : f32 to vector<8x512xf32>
    %138 = vector.shape_cast %93 : vector<1x512xi1> to vector<1x512xi1>
    %139 = vector.broadcast %138 : vector<1x512xi1> to vector<8x512xi1>
    %140 = arith.select %139, %126, %137 : vector<8x512xi1>, vector<8x512xf32>
    %c16 = arith.constant 16 : index
    %c0_58 = arith.constant 0 : index
    %141 = vector.load %arg5[%c16, %c0_58] : memref<32x512xf32, #tpu.memory_space<vmem>>, vector<8x512xf32>
    tpu.vector_store %arg5[%c16, %c0_58], %140 {strides = array<i32>} : memref<32x512xf32, #tpu.memory_space<vmem>>, vector<8x512xf32>,
    %cst_59 = arith.constant 0.000000e+00 : f32
    %142 = vector.broadcast %cst_59 : f32 to vector<8x512xf32>
    %143 = vector.shape_cast %122 : vector<1x512xi1> to vector<1x512xi1>
    %144 = vector.broadcast %143 : vector<1x512xi1> to vector<8x512xi1>
    %145 = arith.select %144, %126, %142 : vector<8x512xi1>, vector<8x512xf32>
    %c24 = arith.constant 24 : index
    %c0_60 = arith.constant 0 : index
    %146 = vector.load %arg5[%c24, %c0_60] : memref<32x512xf32, #tpu.memory_space<vmem>>, vector<8x512xf32>
    tpu.vector_store %arg5[%c24, %c0_60], %145 {strides = array<i32>} : memref<32x512xf32, #tpu.memory_space<vmem>>, vector<8x512xf32>,
    %c8_61 = arith.constant 8 : index
    %c111 = arith.constant 111 : index
    %147 = vector.load %arg5[%c8_61, %c111] : memref<32x512xf32, #tpu.memory_space<vmem>>, vector<4x256xf32>
    %c0_62 = arith.constant 0 : index
    %c112 = arith.constant 112 : index
    %148 = vector.load %arg4[%c0_62, %c112] : memref<8x512xf32, #tpu.memory_space<vmem>>, vector<4x256xf32>
    %149 = tpu.concatenate %147, %148 in 0 : vector<4x256xf32>, vector<4x256xf32> -> vector<8x256xf32>
    %c0_63 = arith.constant 0 : index
    %c0_64 = arith.constant 0 : index
    %150 = vector.load %arg6[%c0_63, %c0_64] : memref<137x256xf32, #tpu.memory_space<vmem>>, vector<8x256xf32>
    tpu.vector_store %arg6[%c0_63, %c0_64], %149 {strides = array<i32>} : memref<137x256xf32, #tpu.memory_space<vmem>>, vector<8x256xf32>,
    %c16_65 = arith.constant 16 : index
    %c113 = arith.constant 113 : index
    %151 = vector.load %arg5[%c16_65, %c113] : memref<32x512xf32, #tpu.memory_space<vmem>>, vector<4x256xf32>
    %c8_66 = arith.constant 8 : index
    %c127 = arith.constant 127 : index
    %152 = vector.load %arg5[%c8_66, %c127] : memref<32x512xf32, #tpu.memory_space<vmem>>, vector<4x256xf32>
    %153 = tpu.concatenate %151, %152 in 0 : vector<4x256xf32>, vector<4x256xf32> -> vector<8x256xf32>
    %c8_67 = arith.constant 8 : index
    %c0_68 = arith.constant 0 : index
    %154 = vector.load %arg6[%c8_67, %c0_68] : memref<137x256xf32, #tpu.memory_space<vmem>>, vector<8x256xf32>
    tpu.vector_store %arg6[%c8_67, %c0_68], %153 {strides = array<i32>} : memref<137x256xf32, #tpu.memory_space<vmem>>, vector<8x256xf32>,
    %c0_69 = arith.constant 0 : index
    %c128_70 = arith.constant 128 : index
    %155 = vector.load %arg4[%c0_69, %c128_70] : memref<8x512xf32, #tpu.memory_space<vmem>>, vector<4x256xf32>
    %c16_71 = arith.constant 16 : index
    %c129 = arith.constant 129 : index
    %156 = vector.load %arg5[%c16_71, %c129] : memref<32x512xf32, #tpu.memory_space<vmem>>, vector<4x256xf32>
    %157 = tpu.concatenate %155, %156 in 0 : vector<4x256xf32>, vector<4x256xf32> -> vector<8x256xf32>
    %c16_72 = arith.constant 16 : index
    %c0_73 = arith.constant 0 : index
    %158 = vector.load %arg6[%c16_72, %c0_73] : memref<137x256xf32, #tpu.memory_space<vmem>>, vector<8x256xf32>
    tpu.vector_store %arg6[%c16_72, %c0_73], %157 {strides = array<i32>} : memref<137x256xf32, #tpu.memory_space<vmem>>, vector<8x256xf32>,
    %c8_74 = arith.constant 8 : index
    %c143 = arith.constant 143 : index
    %159 = vector.load %arg5[%c8_74, %c143] : memref<32x512xf32, #tpu.memory_space<vmem>>, vector<4x256xf32>
    %c0_75 = arith.constant 0 : index
    %c144 = arith.constant 144 : index
    %160 = vector.load %arg4[%c0_75, %c144] : memref<8x512xf32, #tpu.memory_space<vmem>>, vector<4x256xf32>
    %161 = tpu.concatenate %159, %160 in 0 : vector<4x256xf32>, vector<4x256xf32> -> vector<8x256xf32>
    %c24_76 = arith.constant 24 : index
    %c0_77 = arith.constant 0 : index
    %162 = vector.load %arg6[%c24_76, %c0_77] : memref<137x256xf32, #tpu.memory_space<vmem>>, vector<8x256xf32>
    tpu.vector_store %arg6[%c24_76, %c0_77], %161 {strides = array<i32>} : memref<137x256xf32, #tpu.memory_space<vmem>>, vector<8x256xf32>,
    %c16_78 = arith.constant 16 : index
    %c145 = arith.constant 145 : index
    %163 = vector.load %arg5[%c16_78, %c145] : memref<32x512xf32, #tpu.memory_space<vmem>>, vector<4x256xf32>
    %c4 = arith.constant 4 : index
    %c94 = arith.constant 94 : index
    %164 = vector.load %arg5[%c4, %c94] : memref<32x512xf32, #tpu.memory_space<vmem>>, vector<4x256xf32>
    %165 = tpu.concatenate %163, %164 in 0 : vector<4x256xf32>, vector<4x256xf32> -> vector<8x256xf32>
    %c32 = arith.constant 32 : index
    %c0_79 = arith.constant 0 : index
    %166 = vector.load %arg6[%c32, %c0_79] : memref<137x256xf32, #tpu.memory_space<vmem>>, vector<8x256xf32>
    tpu.vector_store %arg6[%c32, %c0_79], %165 {strides = array<i32>} : memref<137x256xf32, #tpu.memory_space<vmem>>, vector<8x256xf32>,
    %c12 = arith.constant 12 : index
    %c95 = arith.constant 95 : index
    %167 = vector.load %arg5[%c12, %c95] : memref<32x512xf32, #tpu.memory_space<vmem>>, vector<4x256xf32>
    %c4_80 = arith.constant 4 : index
    %c96 = arith.constant 96 : index
    %168 = vector.load %arg4[%c4_80, %c96] : memref<8x512xf32, #tpu.memory_space<vmem>>, vector<4x256xf32>
    %169 = tpu.concatenate %167, %168 in 0 : vector<4x256xf32>, vector<4x256xf32> -> vector<8x256xf32>
    %c40 = arith.constant 40 : index
    %c0_81 = arith.constant 0 : index
    %170 = vector.load %arg6[%c40, %c0_81] : memref<137x256xf32, #tpu.memory_space<vmem>>, vector<8x256xf32>
    tpu.vector_store %arg6[%c40, %c0_81], %169 {strides = array<i32>} : memref<137x256xf32, #tpu.memory_space<vmem>>, vector<8x256xf32>,
    %c20 = arith.constant 20 : index
    %c97 = arith.constant 97 : index
    %171 = vector.load %arg5[%c20, %c97] : memref<32x512xf32, #tpu.memory_space<vmem>>, vector<4x256xf32>
    %c28 = arith.constant 28 : index
    %c98 = arith.constant 98 : index
    %172 = vector.load %arg5[%c28, %c98] : memref<32x512xf32, #tpu.memory_space<vmem>>, vector<4x256xf32>
    %173 = tpu.concatenate %171, %172 in 0 : vector<4x256xf32>, vector<4x256xf32> -> vector<8x256xf32>
    %c48 = arith.constant 48 : index
    %c0_82 = arith.constant 0 : index
    %174 = vector.load %arg6[%c48, %c0_82] : memref<137x256xf32, #tpu.memory_space<vmem>>, vector<8x256xf32>
    tpu.vector_store %arg6[%c48, %c0_82], %173 {strides = array<i32>} : memref<137x256xf32, #tpu.memory_space<vmem>>, vector<8x256xf32>,
    %c4_83 = arith.constant 4 : index
    %c110 = arith.constant 110 : index
    %175 = vector.load %arg5[%c4_83, %c110] : memref<32x512xf32, #tpu.memory_space<vmem>>, vector<4x256xf32>
    %c12_84 = arith.constant 12 : index
    %c111_85 = arith.constant 111 : index
    %176 = vector.load %arg5[%c12_84, %c111_85] : memref<32x512xf32, #tpu.memory_space<vmem>>, vector<4x256xf32>
    %177 = tpu.concatenate %175, %176 in 0 : vector<4x256xf32>, vector<4x256xf32> -> vector<8x256xf32>
    %c56 = arith.constant 56 : index
    %c0_86 = arith.constant 0 : index
    %178 = vector.load %arg6[%c56, %c0_86] : memref<137x256xf32, #tpu.memory_space<vmem>>, vector<8x256xf32>
    tpu.vector_store %arg6[%c56, %c0_86], %177 {strides = array<i32>} : memref<137x256xf32, #tpu.memory_space<vmem>>, vector<8x256xf32>,
    %c4_87 = arith.constant 4 : index
    %c112_88 = arith.constant 112 : index
    %179 = vector.load %arg4[%c4_87, %c112_88] : memref<8x512xf32, #tpu.memory_space<vmem>>, vector<4x256xf32>
    %c20_89 = arith.constant 20 : index
    %c113_90 = arith.constant 113 : index
    %180 = vector.load %arg5[%c20_89, %c113_90] : memref<32x512xf32, #tpu.memory_space<vmem>>, vector<4x256xf32>
    %181 = tpu.concatenate %179, %180 in 0 : vector<4x256xf32>, vector<4x256xf32> -> vector<8x256xf32>
    %c64 = arith.constant 64 : index
    %c0_91 = arith.constant 0 : index
    %182 = vector.load %arg6[%c64, %c0_91] : memref<137x256xf32, #tpu.memory_space<vmem>>, vector<8x256xf32>
    tpu.vector_store %arg6[%c64, %c0_91], %181 {strides = array<i32>} : memref<137x256xf32, #tpu.memory_space<vmem>>, vector<8x256xf32>,
    %c28_92 = arith.constant 28 : index
    %c114 = arith.constant 114 : index
    %183 = vector.load %arg5[%c28_92, %c114] : memref<32x512xf32, #tpu.memory_space<vmem>>, vector<4x256xf32>
    %c4_93 = arith.constant 4 : index
    %c126 = arith.constant 126 : index
    %184 = vector.load %arg5[%c4_93, %c126] : memref<32x512xf32, #tpu.memory_space<vmem>>, vector<4x256xf32>
    %185 = tpu.concatenate %183, %184 in 0 : vector<4x256xf32>, vector<4x256xf32> -> vector<8x256xf32>
    %c72 = arith.constant 72 : index
    %c0_94 = arith.constant 0 : index
    %186 = vector.load %arg6[%c72, %c0_94] : memref<137x256xf32, #tpu.memory_space<vmem>>, vector<8x256xf32>
    tpu.vector_store %arg6[%c72, %c0_94], %185 {strides = array<i32>} : memref<137x256xf32, #tpu.memory_space<vmem>>, vector<8x256xf32>,
    %c12_95 = arith.constant 12 : index
    %c127_96 = arith.constant 127 : index
    %187 = vector.load %arg5[%c12_95, %c127_96] : memref<32x512xf32, #tpu.memory_space<vmem>>, vector<4x256xf32>
    %c4_97 = arith.constant 4 : index
    %c128_98 = arith.constant 128 : index
    %188 = vector.load %arg4[%c4_97, %c128_98] : memref<8x512xf32, #tpu.memory_space<vmem>>, vector<4x256xf32>
    %189 = tpu.concatenate %187, %188 in 0 : vector<4x256xf32>, vector<4x256xf32> -> vector<8x256xf32>
    %c80 = arith.constant 80 : index
    %c0_99 = arith.constant 0 : index
    %190 = vector.load %arg6[%c80, %c0_99] : memref<137x256xf32, #tpu.memory_space<vmem>>, vector<8x256xf32>
    tpu.vector_store %arg6[%c80, %c0_99], %189 {strides = array<i32>} : memref<137x256xf32, #tpu.memory_space<vmem>>, vector<8x256xf32>,
    %c20_100 = arith.constant 20 : index
    %c129_101 = arith.constant 129 : index
    %191 = vector.load %arg5[%c20_100, %c129_101] : memref<32x512xf32, #tpu.memory_space<vmem>>, vector<4x256xf32>
    %c28_102 = arith.constant 28 : index
    %c130 = arith.constant 130 : index
    %192 = vector.load %arg5[%c28_102, %c130] : memref<32x512xf32, #tpu.memory_space<vmem>>, vector<4x256xf32>
    %193 = tpu.concatenate %191, %192 in 0 : vector<4x256xf32>, vector<4x256xf32> -> vector<8x256xf32>
    %c88 = arith.constant 88 : index
    %c0_103 = arith.constant 0 : index
    %194 = vector.load %arg6[%c88, %c0_103] : memref<137x256xf32, #tpu.memory_space<vmem>>, vector<8x256xf32>
    tpu.vector_store %arg6[%c88, %c0_103], %193 {strides = array<i32>} : memref<137x256xf32, #tpu.memory_space<vmem>>, vector<8x256xf32>,
    %c4_104 = arith.constant 4 : index
    %c142 = arith.constant 142 : index
    %195 = vector.load %arg5[%c4_104, %c142] : memref<32x512xf32, #tpu.memory_space<vmem>>, vector<4x256xf32>
    %c12_105 = arith.constant 12 : index
    %c143_106 = arith.constant 143 : index
    %196 = vector.load %arg5[%c12_105, %c143_106] : memref<32x512xf32, #tpu.memory_space<vmem>>, vector<4x256xf32>
    %197 = tpu.concatenate %195, %196 in 0 : vector<4x256xf32>, vector<4x256xf32> -> vector<8x256xf32>
    %c96_107 = arith.constant 96 : index
    %c0_108 = arith.constant 0 : index
    %198 = vector.load %arg6[%c96_107, %c0_108] : memref<137x256xf32, #tpu.memory_space<vmem>>, vector<8x256xf32>
    tpu.vector_store %arg6[%c96_107, %c0_108], %197 {strides = array<i32>} : memref<137x256xf32, #tpu.memory_space<vmem>>, vector<8x256xf32>,
    %c4_109 = arith.constant 4 : index
    %c144_110 = arith.constant 144 : index
    %199 = vector.load %arg4[%c4_109, %c144_110] : memref<8x512xf32, #tpu.memory_space<vmem>>, vector<4x256xf32>
    %c20_111 = arith.constant 20 : index
    %c145_112 = arith.constant 145 : index
    %200 = vector.load %arg5[%c20_111, %c145_112] : memref<32x512xf32, #tpu.memory_space<vmem>>, vector<4x256xf32>
    %201 = tpu.concatenate %199, %200 in 0 : vector<4x256xf32>, vector<4x256xf32> -> vector<8x256xf32>
    %c104 = arith.constant 104 : index
    %c0_113 = arith.constant 0 : index
    %202 = vector.load %arg6[%c104, %c0_113] : memref<137x256xf32, #tpu.memory_space<vmem>>, vector<8x256xf32>
    tpu.vector_store %arg6[%c104, %c0_113], %201 {strides = array<i32>} : memref<137x256xf32, #tpu.memory_space<vmem>>, vector<8x256xf32>,
    %c28_114 = arith.constant 28 : index
    %c146 = arith.constant 146 : index
    %203 = vector.load %arg5[%c28_114, %c146] : memref<32x512xf32, #tpu.memory_space<vmem>>, vector<4x256xf32>
    %c4_115 = arith.constant 4 : index
    %c158 = arith.constant 158 : index
    %204 = vector.load %arg5[%c4_115, %c158] : memref<32x512xf32, #tpu.memory_space<vmem>>, vector<4x256xf32>
    %205 = tpu.concatenate %203, %204 in 0 : vector<4x256xf32>, vector<4x256xf32> -> vector<8x256xf32>
    %c112_116 = arith.constant 112 : index
    %c0_117 = arith.constant 0 : index
    %206 = vector.load %arg6[%c112_116, %c0_117] : memref<137x256xf32, #tpu.memory_space<vmem>>, vector<8x256xf32>
    tpu.vector_store %arg6[%c112_116, %c0_117], %205 {strides = array<i32>} : memref<137x256xf32, #tpu.memory_space<vmem>>, vector<8x256xf32>,
    %c12_118 = arith.constant 12 : index
    %c159 = arith.constant 159 : index
    %207 = vector.load %arg5[%c12_118, %c159] : memref<32x512xf32, #tpu.memory_space<vmem>>, vector<4x256xf32>
    %c4_119 = arith.constant 4 : index
    %c160 = arith.constant 160 : index
    %208 = vector.load %arg4[%c4_119, %c160] : memref<8x512xf32, #tpu.memory_space<vmem>>, vector<4x256xf32>
    %209 = tpu.concatenate %207, %208 in 0 : vector<4x256xf32>, vector<4x256xf32> -> vector<8x256xf32>
    %c120 = arith.constant 120 : index
    %c0_120 = arith.constant 0 : index
    %210 = vector.load %arg6[%c120, %c0_120] : memref<137x256xf32, #tpu.memory_space<vmem>>, vector<8x256xf32>
    tpu.vector_store %arg6[%c120, %c0_120], %209 {strides = array<i32>} : memref<137x256xf32, #tpu.memory_space<vmem>>, vector<8x256xf32>,
    %c20_121 = arith.constant 20 : index
    %c161 = arith.constant 161 : index
    %211 = vector.load %arg5[%c20_121, %c161] : memref<32x512xf32, #tpu.memory_space<vmem>>, vector<4x256xf32>
    %c28_122 = arith.constant 28 : index
    %c162 = arith.constant 162 : index
    %212 = vector.load %arg5[%c28_122, %c162] : memref<32x512xf32, #tpu.memory_space<vmem>>, vector<4x256xf32>
    %213 = tpu.concatenate %211, %212 in 0 : vector<4x256xf32>, vector<4x256xf32> -> vector<8x256xf32>
    %c128_123 = arith.constant 128 : index
    %c0_124 = arith.constant 0 : index
    %214 = vector.load %arg6[%c128_123, %c0_124] : memref<137x256xf32, #tpu.memory_space<vmem>>, vector<8x256xf32>
    tpu.vector_store %arg6[%c128_123, %c0_124], %213 {strides = array<i32>} : memref<137x256xf32, #tpu.memory_space<vmem>>, vector<8x256xf32>,
    %c0_125 = arith.constant 0 : index
    %c0_126 = arith.constant 0 : index
    %215 = vector.load %arg2[%c0_125, %c0_126] : memref<8x137xf32, #tpu.memory_space<vmem>>, vector<8x137xf32>
    %c0_127 = arith.constant 0 : index
    %c0_128 = arith.constant 0 : index
    %216 = vector.load %arg6[%c0_127, %c0_128] : memref<137x256xf32, #tpu.memory_space<vmem>>, vector<137x256xf32>
    %cst_129 = arith.constant dense<0.000000e+00> : vector<8x256xf32>
    %217 = tpu.matmul %215, %216, %cst_129 {dimension_numbers = #tpu.dot_dimension_numbers<[1], [0], [0], [1], [0, 0, 1, 1], [], []>} : vector<8x137xf32>, vector<137x256xf32>, vector<8x256xf32> -> vector<8x256xf32>
    %c0_130 = arith.constant 0 : index
    %c0_131 = arith.constant 0 : index
    %c0_132 = arith.constant 0 : index
    %218 = vector.load %arg3[%c0_130, %c0_131, %c0_132] : memref<1x8x256xf32, #tpu.memory_space<vmem>>, vector<1x8x256xf32>
    %219 = vector.shape_cast %218 : vector<1x8x256xf32> to vector<8x256xf32>
    %220 = vector.shape_cast %217 : vector<8x256xf32> to vector<1x8x256xf32>
    tpu.vector_store %arg3[%c0_130, %c0_131, %c0_132], %220 {strides = array<i32>} : memref<1x8x256xf32, #tpu.memory_space<vmem>>, vector<1x8x256xf32>,
    return
  }
  func.func @transform_0(%arg0: i32) -> (i32, i32, i32) {
    %c0_i32 = arith.constant 0 : i32
    %c0_i32_0 = arith.constant 0 : i32
    %c0_i32_1 = arith.constant 0 : i32
    return %arg0, %c0_i32, %c0_i32_0 : i32, i32, i32
  }
  func.func @transform_1(%arg0: i32) -> (i32, i32) {
    %c0_i32 = arith.constant 0 : i32
    %c0_i32_0 = arith.constant 0 : i32
    %c0_i32_1 = arith.constant 0 : i32
    return %c0_i32, %c0_i32_0 : i32, i32
  }
  func.func @transform_2(%arg0: i32) -> (i32, i32, i32) {
    %c0_i32 = arith.constant 0 : i32
    %c0_i32_0 = arith.constant 0 : i32
    %c0_i32_1 = arith.constant 0 : i32
    return %arg0, %c0_i32, %c0_i32_0 : i32, i32, i32
  }
}

</mosaic_0001>

<llo_original>
// kernel: mixconv2d_forward.1
$region0: #{mixconv2d_forward.1}
  #allocation0 [shape = 'u32[]', space=smem, size = 0x4, offset = 0x4, fixed_abs, tag = 'smem constant byte address 0x4 - core index']
  #allocation1 [shape = 'u32[144,128]{1,0:T(1,128)}', space=vmem, size = 0x12000, scoped, tag = 'internal scratch']
  #allocation2 [shape = 'f32[8,512]{1,0:T(8,128)}', space=vmem, size = 0x4000, scoped, tag = 'scratch operand']
  #allocation3 [shape = 'f32[32,512]{1,0:T(8,128)}', space=vmem, size = 0x10000, scoped, tag = 'scratch operand']
  #allocation4 [shape = 'f32[137,256]{1,0:T(8,128)}', space=vmem, size = 0x24000, scoped, tag = 'scratch operand']
  %s0 = inlined_call_operand.vmem [shape: f32[2,8,256], index: 0, kind: input, shape index: {}]
  %s1 = inlined_call_operand.vmem [shape: f32[8,137], index: 1, kind: input, shape index: {}]
  %s2 = inlined_call_operand.vmem [shape: f32[2,8,256], index: 2, kind: output, shape index: {}]
  %s3 = sld [smem:[#allocation0]]
  $region41: #{mixconv2d_forward.1} parent=0
    _
  %s5 = ssub.s32 1, %s3
  %s6 = scalar_select 0, %s5, %s3
  loop: start=0, step=1, limit=4
  $region2: #{mixconv2d_forward.1} parent=0 // loop_pre_header
    _
  $region3: #{mixconv2d_forward.1} parent=0 // loop_header
    %s8 = sphi 0, %s12
    %p9 = scmp.ge.s32.totalorder %s8, 4
    %s18 = sphi 0, %s20
    %s21 = sphi 0, %s18
    %s22 = sphi 0, %s21
    %s38 = sphi 0, %s22
    %s42 = sphi 0, %s42
    %s44 = sphi 0, %s42
    %s45 = sphi 0, %s44
    %s59 = sphi 0, %s45
    %s65 = sphi 0, %s67
    %s68 = sphi 0, %s65
    %s69 = sphi 0, %s68
    %s85 = sphi 0, %s69
  $region4: #{mixconv2d_forward.1} parent=0 // loop_header_branch
    %11 = sbr.rel (%p9) target = $region8
  $region5: #{mixconv2d_forward.1} parent=0 // loop_body
    %s13 = ssub.s32 %s8, 1
    %s14 = ssub.s32 %s8, 2
    %s15 = sadd.s32 %s8, 1
    %s16 = ssub.s32 %s8, %s15
    %p17 = scmp.eq.s32.totalorder %s16, 0
    %s19 = sadd.s32 %s18, 1
    %s20 = scalar_select %p17, %s18, %s19
    %p23 = pneg %p17
    %p24 = scmp.eq.s32.totalorder %s8, 1
    %p25 = por %p23, %p24
    %p26 = scmp.ne.s32.totalorder %s18, %s21
    %p27 = scmp.eq.s32.totalorder %s8, 0
    %p28 = por %p26, %p27
    %p29 = scmp.ne.s32.totalorder %s18, %s21
    %p30 = scmp.eq.s32.totalorder %s13, 1
    %p31 = por %p29, %p30
    %p32 = scmp.ne.s32.totalorder %s21, %s22
    %p33 = scmp.eq.s32.totalorder %s13, 0
    %p34 = por %p32, %p33
    %p35 = scmp.ne.s32.totalorder %s21, %s22
    %p36 = scmp.eq.s32.totalorder %s14, 1
    %p37 = por %p35, %p36
    %p39 = scmp.ne.s32.totalorder %s22, %s38
    %p40 = scmp.eq.s32.totalorder %s14, 0
    %p41 = por %p39, %p40
    %s43 = sadd.s32 %s42, 1
    %p46 = scmp.eq.s32.totalorder %s8, 1
    %p47 = scmp.ne.s32.totalorder %s42, %s44
    %p48 = scmp.eq.s32.totalorder %s8, 0
    %p49 = por %p47, %p48
    %p50 = scmp.ne.s32.totalorder %s42, %s44
    %p51 = scmp.eq.s32.totalorder %s13, 1
    %p52 = por %p50, %p51
    %p53 = scmp.ne.s32.totalorder %s44, %s45
    %p54 = scmp.eq.s32.totalorder %s13, 0
    %p55 = por %p53, %p54
    %p56 = scmp.ne.s32.totalorder %s44, %s45
    %p57 = scmp.eq.s32.totalorder %s14, 1
    %p58 = por %p56, %p57
    %p60 = scmp.ne.s32.totalorder %s45, %s59
    %p61 = scmp.eq.s32.totalorder %s14, 0
    %p62 = por %p60, %p61
    %s63 = ssub.s32 %s8, %s15
    %p64 = scmp.eq.s32.totalorder %s63, 0
    %s66 = sadd.s32 %s65, 1
    %s67 = scalar_select %p64, %s65, %s66
    %p70 = pneg %p64
    %p71 = scmp.eq.s32.totalorder %s8, 1
    %p72 = por %p70, %p71
    %p73 = scmp.ne.s32.totalorder %s65, %s68
    %p74 = scmp.eq.s32.totalorder %s8, 0
    %p75 = por %p73, %p74
    %p76 = scmp.ne.s32.totalorder %s65, %s68
    %p77 = scmp.eq.s32.totalorder %s13, 1
    %p78 = por %p76, %p77
    %p79 = scmp.ne.s32.totalorder %s68, %s69
    %p80 = scmp.eq.s32.totalorder %s13, 0
    %p81 = por %p79, %p80
    %p82 = scmp.ne.s32.totalorder %s68, %s69
    %p83 = scmp.eq.s32.totalorder %s14, 1
    %p84 = por %p82, %p83
    %p86 = scmp.ne.s32.totalorder %s69, %s85
    %p87 = scmp.eq.s32.totalorder %s14, 0
    %p88 = por %p86, %p87
    %p89 = scmp.le.s32.totalorder 1, %s8
    %p90 = scmp.lt.s32.totalorder %s8, 3
    %p91 = pnand %p89, %p90
    %p92 = pneg %p91
    // Predicated region
    $region9: #{mixconv2d_forward.1} parent=5 // pred_check
      _
    $region10: #{mixconv2d_forward.1} parent=5 // pred_check_branch
      %94 = sbr.rel (%p91) target = $region12
    $region11: #{mixconv2d_forward.1} parent=5 // pred_region
      %s95 = ssub.s32 %s8, 1
      // Predicated region
      $region13: #{mixconv2d_forward.1} parent=11 // pred_check
        %p96 = pneg %p55
      $region14: #{mixconv2d_forward.1} parent=11 // pred_check_branch
        %98 = sbr.rel (%p96) target = $region16
      $region15: #{mixconv2d_forward.1} parent=11 // pred_region
        _
      $region16: #{mixconv2d_forward.1} parent=11 // pred_fallthru
        _
    $region12: #{mixconv2d_forward.1} parent=5 // pred_fallthru
      _
    %p99 = scmp.lt.s32.totalorder %s8, 2
    // Predicated region
    $region17: #{mixconv2d_forward.1} parent=5 // pred_check
      %p100 = pneg %p99
    $region18: #{mixconv2d_forward.1} parent=5 // pred_check_branch
      %102 = sbr.rel (%p100) target = $region20
    $region19: #{mixconv2d_forward.1} parent=5 // pred_region
      // Predicated region
      $region21: #{mixconv2d_forward.1} parent=19 // pred_check
        %p103 = pneg %p28
      $region22: #{mixconv2d_forward.1} parent=19 // pred_check_branch
        %105 = sbr.rel (%p103) target = $region24
      $region23: #{mixconv2d_forward.1} parent=19 // pred_region
        %p106 = scmp.lt.s32.totalorder %s8, 1
        %s107 = scalar_select %p106, %s8, 1
        %s108 = smul.addr %s107, 2
        %s109 = smul.addr %s108, 8
        %s110 = scalar_lea.vmem %s0, %s109
      $region24: #{mixconv2d_forward.1} parent=19 // pred_fallthru
        _
    $region20: #{mixconv2d_forward.1} parent=5 // pred_fallthru
      _
    %p111 = scmp.le.s32.totalorder 1, %s8
    %p112 = scmp.lt.s32.totalorder %s8, 3
    %p113 = pnand %p111, %p112
    %p114 = pneg %p113
    // Predicated region
    $region25: #{mixconv2d_forward.1} parent=5 // pred_check
      _
    $region26: #{mixconv2d_forward.1} parent=5 // pred_check_branch
      %116 = sbr.rel (%p113) target = $region28
    $region27: #{mixconv2d_forward.1} parent=5 // pred_region
      %s117 = ssub.s32 %s8, 1
      %p118 = scmp.lt.s32.totalorder %s13, 1
      %s119 = scalar_select %p118, %s13, 1
      %s120 = smul.addr %s119, 2
      %s121 = smul.addr %s120, 8
      %s122 = scalar_lea.vmem %s0, %s121
      %p123 = pneg %p34
      %p124 = pneg %p31
      %p125 = pneg %p55
      %p126 = pneg %p52
      %p127 = pneg %p81
      %p128 = pneg %p78
      %p129 = scmp.lt.s32.totalorder %s13, 1
      %s130 = scalar_select %p129, %s13, 1
      %s131 = smul.addr %s130, 2
      %s132 = smul.addr %s131, 8
      %s133 = scalar_lea.vmem %s2, %s132
      %p134 = scmp.lt.s32.totalorder %s13, 1
      %s135 = scalar_select %p134, %s13, 1
      %s136 = smul.addr %s135, 2
      %s137 = smul.addr %s136, 8
      %s138 = scalar_lea.vmem %s0, %s137
      %p139 = scmp.lt.s32.totalorder %s13, 1
      %s140 = scalar_select %p139, %s13, 1
      %s141 = smul.addr %s140, 2
      %s142 = smul.addr %s141, 8
      %s143 = scalar_lea.vmem %s2, %s142
      %144 = vst [vmem:[#allocation2] sm:$0xff] 0.0
      %145 = vst [vmem:[#allocation2 + $0x18] sm:$0xff] 0.0
      %v146 = vlaneseq
      %vm147 = vcmp.ge.s32.totalorder %v146, 0
      %vm148 = vcmp.lt.s32.totalorder %v146, 256
      %vm149 = vmand %vm147, %vm148
      %s150 = scalar_lea.vmem [#allocation4], 272
      %151 = vst.msk [vmem:[%s150] ss:$8 sm:$0x3] %vm149, 1.0
      %152 = vst.msk [vmem:[%s150] ss:$8 sm:$0x0] %vm149, 1.0
      %v153 = vlaneseq
      %v154 = vand.u32 %v153, 127
      %v155 = vadd.s32 %v154, 256
      %v156 = vadd.s32 %v154, 384
      %v157 = vsub.s32 %v154, 128
      %v158 = vsub.s32 %v155, 128
      %v159 = vsub.s32 %v156, 128
      %v160 = vsub.s32 %v157, 4294967294
      %v161 = vsub.s32 %v154, 4294967294
      %v162 = vsub.s32 %v158, 4294967294
      %v163 = vsub.s32 %v159, 4294967294
      %vm164 = vcmp.lt.s32.totalorder %v160, 0
      %v165 = vsub.s32 0, %v160
      %v166 = vsel %vm164, %v165, %v160
      %v167 = vshrl.u32 %v166, 4
      %v168 = vand.u32 %v166, 15
      %v169 = vsub.s32 0, %v168
      %v170 = vsel %vm164, %v169, %v168
      %vm171 = vcmp.lt.s32.totalorder %v161, 0
      %v172 = vsub.s32 0, %v161
      %v173 = vsel %vm171, %v172, %v161
      %v174 = vshrl.u32 %v173, 4
      %v175 = vand.u32 %v173, 15
      %v176 = vsub.s32 0, %v175
      %v177 = vsel %vm171, %v176, %v175
      %vm178 = vcmp.lt.s32.totalorder %v162, 0
      %v179 = vsub.s32 0, %v162
      %v180 = vsel %vm178, %v179, %v162
      %v181 = vshrl.u32 %v180, 4
      %v182 = vand.u32 %v180, 15
      %v183 = vsub.s32 0, %v182
      %v184 = vsel %vm178, %v183, %v182
      %vm185 = vcmp.lt.s32.totalorder %v163, 0
      %v186 = vsub.s32 0, %v163
      %v187 = vsel %vm185, %v186, %v163
      %v188 = vshrl.u32 %v187, 4
      %v189 = vand.u32 %v187, 15
      %v190 = vsub.s32 0, %v189
      %v191 = vsel %vm185, %v190, %v189
      %vm192 = vcmp.ne.s32.totalorder %v170, 0
      %vm193 = vcmp.ne.s32.totalorder %v177, 0
      %vm194 = vcmp.ne.s32.totalorder %v184, 0
      %vm195 = vcmp.ne.s32.totalorder %v191, 0
      %vm196 = vcmp.lt.s32.totalorder %v170, 0
      %vm197 = vcmp.lt.s32.totalorder %v177, 0
      %vm198 = vcmp.lt.s32.totalorder %v184, 0
      %vm199 = vcmp.lt.s32.totalorder %v191, 0
      %vm200 = vmand %vm196, %vm192
      %vm201 = vmand %vm197, %vm193
      %vm202 = vmand %vm198, %vm194
      %vm203 = vmand %vm199, %vm195
      %v204 = vadd.s32 %v170, 16
      %v205 = vadd.s32 %v177, 16
      %v206 = vadd.s32 %v184, 16
      %v207 = vadd.s32 %v191, 16
      %v208 = vsel %vm200, %v204, %v170
      %v209 = vsel %vm201, %v205, %v177
      %v210 = vsel %vm202, %v206, %v184
      %v211 = vsel %vm203, %v207, %v191
      %v212 = vadd.s32 %v208, 4294967294
      %v213 = vadd.s32 %v209, 4294967294
      %v214 = vadd.s32 %v210, 4294967294
      %v215 = vadd.s32 %v211, 4294967294
      %vm216 = vcmp.ge.s32.totalorder %v212, 0
      %vm217 = vcmp.ge.s32.totalorder %v213, 0
      %vm218 = vcmp.ge.s32.totalorder %v214, 0
      %vm219 = vcmp.ge.s32.totalorder %v215, 0
      %vm220 = vcmp.lt.s32.totalorder %v212, 16
      %vm221 = vcmp.lt.s32.totalorder %v213, 16
      %vm222 = vcmp.lt.s32.totalorder %v214, 16
      %vm223 = vcmp.lt.s32.totalorder %v215, 16
      %vm224 = vmand %vm216, %vm220
      %vm225 = vmand %vm217, %vm221
      %vm226 = vmand %vm218, %vm222
      %vm227 = vmand %vm219, %vm223
      %v228 = vsub.s32 %v157, 4294967295
      %v229 = vsub.s32 %v154, 4294967295
      %v230 = vsub.s32 %v158, 4294967295
      %v231 = vsub.s32 %v159, 4294967295
      %vm232 = vcmp.lt.s32.totalorder %v228, 0
      %v233 = vsub.s32 0, %v228
      %v234 = vsel %vm232, %v233, %v228
      %v235 = vshrl.u32 %v234, 4
      %v236 = vand.u32 %v234, 15
      %v237 = vsub.s32 0, %v236
      %v238 = vsel %vm232, %v237, %v236
      %vm239 = vcmp.lt.s32.totalorder %v229, 0
      %v240 = vsub.s32 0, %v229
      %v241 = vsel %vm239, %v240, %v229
      %v242 = vshrl.u32 %v241, 4
      %v243 = vand.u32 %v241, 15
      %v244 = vsub.s32 0, %v243
      %v245 = vsel %vm239, %v244, %v243
      %vm246 = vcmp.lt.s32.totalorder %v230, 0
      %v247 = vsub.s32 0, %v230
      %v248 = vsel %vm246, %v247, %v230
      %v249 = vshrl.u32 %v248, 4
      %v250 = vand.u32 %v248, 15
      %v251 = vsub.s32 0, %v250
      %v252 = vsel %vm246, %v251, %v250
      %vm253 = vcmp.lt.s32.totalorder %v231, 0
      %v254 = vsub.s32 0, %v231
      %v255 = vsel %vm253, %v254, %v231
      %v256 = vshrl.u32 %v255, 4
      %v257 = vand.u32 %v255, 15
      %v258 = vsub.s32 0, %v257
      %v259 = vsel %vm253, %v258, %v257
      %vm260 = vcmp.ne.s32.totalorder %v238, 0
      %vm261 = vcmp.ne.s32.totalorder %v245, 0
      %vm262 = vcmp.ne.s32.totalorder %v252, 0
      %vm263 = vcmp.ne.s32.totalorder %v259, 0
      %vm264 = vcmp.lt.s32.totalorder %v238, 0
      %vm265 = vcmp.lt.s32.totalorder %v245, 0
      %vm266 = vcmp.lt.s32.totalorder %v252, 0
      %vm267 = vcmp.lt.s32.totalorder %v259, 0
      %vm268 = vmand %vm264, %vm260
      %vm269 = vmand %vm265, %vm261
      %vm270 = vmand %vm266, %vm262
      %vm271 = vmand %vm267, %vm263
      %v272 = vadd.s32 %v238, 16
      %v273 = vadd.s32 %v245, 16
      %v274 = vadd.s32 %v252, 16
      %v275 = vadd.s32 %v259, 16
      %v276 = vsel %vm268, %v272, %v238
      %v277 = vsel %vm269, %v273, %v245
      %v278 = vsel %vm270, %v274, %v252
      %v279 = vsel %vm271, %v275, %v259
      %v280 = vadd.s32 %v276, 4294967295
      %v281 = vadd.s32 %v277, 4294967295
      %v282 = vadd.s32 %v278, 4294967295
      %v283 = vadd.s32 %v279, 4294967295
      %vm284 = vcmp.ge.s32.totalorder %v280, 0
      %vm285 = vcmp.ge.s32.totalorder %v281, 0
      %vm286 = vcmp.ge.s32.totalorder %v282, 0
      %vm287 = vcmp.ge.s32.totalorder %v283, 0
      %vm288 = vcmp.lt.s32.totalorder %v280, 16
      %vm289 = vcmp.lt.s32.totalorder %v281, 16
      %vm290 = vcmp.lt.s32.totalorder %v282, 16
      %vm291 = vcmp.lt.s32.totalorder %v283, 16
      %vm292 = vmand %vm284, %vm288
      %vm293 = vmand %vm285, %vm289
      %vm294 = vmand %vm286, %vm290
      %vm295 = vmand %vm287, %vm291
      %v296 = vsub.s32 %v157, 1
      %v297 = vsub.s32 %v154, 1
      %v298 = vsub.s32 %v158, 1
      %v299 = vsub.s32 %v159, 1
      %vm300 = vcmp.lt.s32.totalorder %v296, 0
      %v301 = vsub.s32 0, %v296
      %v302 = vsel %vm300, %v301, %v296
      %v303 = vshrl.u32 %v302, 4
      %v304 = vand.u32 %v302, 15
      %v305 = vsub.s32 0, %v304
      %v306 = vsel %vm300, %v305, %v304
      %vm307 = vcmp.lt.s32.totalorder %v297, 0
      %v308 = vsub.s32 0, %v297
      %v309 = vsel %vm307, %v308, %v297
      %v310 = vshrl.u32 %v309, 4
      %v311 = vand.u32 %v309, 15
      %v312 = vsub.s32 0, %v311
      %v313 = vsel %vm307, %v312, %v311
      %vm314 = vcmp.lt.s32.totalorder %v298, 0
      %v315 = vsub.s32 0, %v298
      %v316 = vsel %vm314, %v315, %v298
      %v317 = vshrl.u32 %v316, 4
      %v318 = vand.u32 %v316, 15
      %v319 = vsub.s32 0, %v318
      %v320 = vsel %vm314, %v319, %v318
      %vm321 = vcmp.lt.s32.totalorder %v299, 0
      %v322 = vsub.s32 0, %v299
      %v323 = vsel %vm321, %v322, %v299
      %v324 = vshrl.u32 %v323, 4
      %v325 = vand.u32 %v323, 15
      %v326 = vsub.s32 0, %v325
      %v327 = vsel %vm321, %v326, %v325
      %vm328 = vcmp.ne.s32.totalorder %v306, 0
      %vm329 = vcmp.ne.s32.totalorder %v313, 0
      %vm330 = vcmp.ne.s32.totalorder %v320, 0
      %vm331 = vcmp.ne.s32.totalorder %v327, 0
      %vm332 = vcmp.lt.s32.totalorder %v306, 0
      %vm333 = vcmp.lt.s32.totalorder %v313, 0
      %vm334 = vcmp.lt.s32.totalorder %v320, 0
      %vm335 = vcmp.lt.s32.totalorder %v327, 0
      %vm336 = vmand %vm332, %vm328
      %vm337 = vmand %vm333, %vm329
      %vm338 = vmand %vm334, %vm330
      %vm339 = vmand %vm335, %vm331
      %v340 = vadd.s32 %v306, 16
      %v341 = vadd.s32 %v313, 16
      %v342 = vadd.s32 %v320, 16
      %v343 = vadd.s32 %v327, 16
      %v344 = vsel %vm336, %v340, %v306
      %v345 = vsel %vm337, %v341, %v313
      %v346 = vsel %vm338, %v342, %v320
      %v347 = vsel %vm339, %v343, %v327
      %v348 = vadd.s32 %v344, 1
      %v349 = vadd.s32 %v345, 1
      %v350 = vadd.s32 %v346, 1
      %v351 = vadd.s32 %v347, 1
      %vm352 = vcmp.ge.s32.totalorder %v348, 0
      %vm353 = vcmp.ge.s32.totalorder %v349, 0
      %vm354 = vcmp.ge.s32.totalorder %v350, 0
      %vm355 = vcmp.ge.s32.totalorder %v351, 0
      %vm356 = vcmp.lt.s32.totalorder %v348, 16
      %vm357 = vcmp.lt.s32.totalorder %v349, 16
      %vm358 = vcmp.lt.s32.totalorder %v350, 16
      %vm359 = vcmp.lt.s32.totalorder %v351, 16
      %vm360 = vmand %vm352, %vm356
      %vm361 = vmand %vm353, %vm357
      %vm362 = vmand %vm354, %vm358
      %vm363 = vmand %vm355, %vm359
      %v364 = vsub.s32 %v157, 2
      %v365 = vsub.s32 %v154, 2
      %v366 = vsub.s32 %v158, 2
      %v367 = vsub.s32 %v159, 2
      %vm368 = vcmp.lt.s32.totalorder %v364, 0
      %v369 = vsub.s32 0, %v364
      %v370 = vsel %vm368, %v369, %v364
      %v371 = vshrl.u32 %v370, 4
      %v372 = vand.u32 %v370, 15
      %v373 = vsub.s32 0, %v372
      %v374 = vsel %vm368, %v373, %v372
      %vm375 = vcmp.lt.s32.totalorder %v365, 0
      %v376 = vsub.s32 0, %v365
      %v377 = vsel %vm375, %v376, %v365
      %v378 = vshrl.u32 %v377, 4
      %v379 = vand.u32 %v377, 15
      %v380 = vsub.s32 0, %v379
      %v381 = vsel %vm375, %v380, %v379
      %vm382 = vcmp.lt.s32.totalorder %v366, 0
      %v383 = vsub.s32 0, %v366
      %v384 = vsel %vm382, %v383, %v366
      %v385 = vshrl.u32 %v384, 4
      %v386 = vand.u32 %v384, 15
      %v387 = vsub.s32 0, %v386
      %v388 = vsel %vm382, %v387, %v386
      %vm389 = vcmp.lt.s32.totalorder %v367, 0
      %v390 = vsub.s32 0, %v367
      %v391 = vsel %vm389, %v390, %v367
      %v392 = vshrl.u32 %v391, 4
      %v393 = vand.u32 %v391, 15
      %v394 = vsub.s32 0, %v393
      %v395 = vsel %vm389, %v394, %v393
      %vm396 = vcmp.ne.s32.totalorder %v374, 0
      %vm397 = vcmp.ne.s32.totalorder %v381, 0
      %vm398 = vcmp.ne.s32.totalorder %v388, 0
      %vm399 = vcmp.ne.s32.totalorder %v395, 0
      %vm400 = vcmp.lt.s32.totalorder %v374, 0
      %vm401 = vcmp.lt.s32.totalorder %v381, 0
      %vm402 = vcmp.lt.s32.totalorder %v388, 0
      %vm403 = vcmp.lt.s32.totalorder %v395, 0
      %vm404 = vmand %vm400, %vm396
      %vm405 = vmand %vm401, %vm397
      %vm406 = vmand %vm402, %vm398
      %vm407 = vmand %vm403, %vm399
      %v408 = vadd.s32 %v374, 16
      %v409 = vadd.s32 %v381, 16
      %v410 = vadd.s32 %v388, 16
      %v411 = vadd.s32 %v395, 16
      %v412 = vsel %vm404, %v408, %v374
      %v413 = vsel %vm405, %v409, %v381
      %v414 = vsel %vm406, %v410, %v388
      %v415 = vsel %vm407, %v411, %v395
      %v416 = vadd.s32 %v412, 2
      %v417 = vadd.s32 %v413, 2
      %v418 = vadd.s32 %v414, 2
      %v419 = vadd.s32 %v415, 2
      %vm420 = vcmp.ge.s32.totalorder %v416, 0
      %vm421 = vcmp.ge.s32.totalorder %v417, 0
      %vm422 = vcmp.ge.s32.totalorder %v418, 0
      %vm423 = vcmp.ge.s32.totalorder %v419, 0
      %vm424 = vcmp.lt.s32.totalorder %v416, 16
      %vm425 = vcmp.lt.s32.totalorder %v417, 16
      %vm426 = vcmp.lt.s32.totalorder %v418, 16
      %vm427 = vcmp.lt.s32.totalorder %v419, 16
      %vm428 = vmand %vm420, %vm424
      %vm429 = vmand %vm421, %vm425
      %vm430 = vmand %vm422, %vm426
      %vm431 = vmand %vm423, %vm427
      %v432 = vld [vmem:[%s138] sm:$0xff]
      %v433 = vld [vmem:[%s138 + $0x8] sm:$0xff]
      %434 = vst [vmem:[#allocation2 + $0x8] sm:$0xff] %v432
      %435 = vst [vmem:[#allocation2 + $0x10] sm:$0xff] %v433
      %v436 = vld [vmem:[#allocation2] sm:$0xff]
      %v437 = vld [vmem:[#allocation2 + $0x8] sm:$0xff]
      %v438 = vld [vmem:[#allocation2 + $0x10] sm:$0xff]
      %v439 = vld [vmem:[#allocation2 + $0x18] sm:$0xff]
      %v440 = vsel %vm224, 1, 0
      %v441 = vsel %vm225, 1, 0
      %v442 = vsel %vm226, 1, 0
      %v443 = vsel %vm227, 1, 0
      %vm444 = vcmp.eq.s32.totalorder %v440, 1
      %vm445 = vcmp.eq.s32.totalorder %v441, 1
      %vm446 = vcmp.eq.s32.totalorder %v442, 1
      %vm447 = vcmp.eq.s32.totalorder %v443, 1
      %v448 = vsel %vm444, %v436, 0.0
      %v449 = vsel %vm445, %v437, 0.0
      %v450 = vsel %vm446, %v438, 0.0
      %v451 = vsel %vm447, %v439, 0.0
      %452 = vst [vmem:[#allocation3] sm:$0xff] %v448
      %453 = vst [vmem:[#allocation3 + $0x8] sm:$0xff] %v449
      %454 = vst [vmem:[#allocation3 + $0x10] sm:$0xff] %v450
      %455 = vst [vmem:[#allocation3 + $0x18] sm:$0xff] %v451
      %v456 = vsel %vm292, 1, 0
      %v457 = vsel %vm293, 1, 0
      %v458 = vsel %vm294, 1, 0
      %v459 = vsel %vm295, 1, 0
      %vm460 = vcmp.eq.s32.totalorder %v456, 1
      %vm461 = vcmp.eq.s32.totalorder %v457, 1
      %vm462 = vcmp.eq.s32.totalorder %v458, 1
      %vm463 = vcmp.eq.s32.totalorder %v459, 1
      %v464 = vsel %vm460, %v436, 0.0
      %v465 = vsel %vm461, %v437, 0.0
      %v466 = vsel %vm462, %v438, 0.0
      %v467 = vsel %vm463, %v439, 0.0
      %468 = vst [vmem:[#allocation3 + $0x20] sm:$0xff] %v464
      %469 = vst [vmem:[#allocation3 + $0x28] sm:$0xff] %v465
      %470 = vst [vmem:[#allocation3 + $0x30] sm:$0xff] %v466
      %471 = vst [vmem:[#allocation3 + $0x38] sm:$0xff] %v467
      %v472 = vsel %vm360, 1, 0
      %v473 = vsel %vm361, 1, 0
      %v474 = vsel %vm362, 1, 0
      %v475 = vsel %vm363, 1, 0
      %vm476 = vcmp.eq.s32.totalorder %v472, 1
      %vm477 = vcmp.eq.s32.totalorder %v473, 1
      %vm478 = vcmp.eq.s32.totalorder %v474, 1
      %vm479 = vcmp.eq.s32.totalorder %v475, 1
      %v480 = vsel %vm476, %v436, 0.0
      %v481 = vsel %vm477, %v437, 0.0
      %v482 = vsel %vm478, %v438, 0.0
      %v483 = vsel %vm479, %v439, 0.0
      %484 = vst [vmem:[#allocation3 + $0x40] sm:$0xff] %v480
      %485 = vst [vmem:[#allocation3 + $0x48] sm:$0xff] %v481
      %486 = vst [vmem:[#allocation3 + $0x50] sm:$0xff] %v482
      %487 = vst [vmem:[#allocation3 + $0x58] sm:$0xff] %v483
      %v488 = vsel %vm428, 1, 0
      %v489 = vsel %vm429, 1, 0
      %v490 = vsel %vm430, 1, 0
      %v491 = vsel %vm431, 1, 0
      %vm492 = vcmp.eq.s32.totalorder %v488, 1
      %vm493 = vcmp.eq.s32.totalorder %v489, 1
      %vm494 = vcmp.eq.s32.totalorder %v490, 1
      %vm495 = vcmp.eq.s32.totalorder %v491, 1
      %v496 = vsel %vm492, %v436, 0.0
      %v497 = vsel %vm493, %v437, 0.0
      %v498 = vsel %vm494, %v438, 0.0
      %v499 = vsel %vm495, %v439, 0.0
      %500 = vst [vmem:[#allocation3 + $0x60] sm:$0xff] %v496
      %501 = vst [vmem:[#allocation3 + $0x68] sm:$0xff] %v497
      %502 = vst [vmem:[#allocation3 + $0x70] sm:$0xff] %v498
      %503 = vst [vmem:[#allocation3 + $0x78] sm:$0xff] %v499
      %v504 = vld [vmem:[#allocation3 + $0x20] sm:$0xf]
      %v505 = vld [vmem:[#allocation3 + $0x28] sm:$0xf]
      %v506 = vld [vmem:[#allocation3 + $0x30] sm:$0xf]
      %v507 = vld [vmem:[#allocation2] sm:$0xf]
      %v508 = vld [vmem:[#allocation2 + $0x8] sm:$0xf]
      %v509 = vld [vmem:[#allocation2 + $0x10] sm:$0xf]
      %v513 = vrot.slane %v507, 4
      %v514 = vrot.slane %v508, 4
      %v515 = vrot.slane %v509, 4
      %516 = vrot.lane.b32.xlu0 %v513, 127
      %v517 = vpop.permute.xlu0 %516
      %518 = vrot.lane.b32.xlu0 %v514, 127
      %v519 = vpop.permute.xlu0 %518
      %520 = vrot.lane.b32.xlu0 %v515, 127
      %v521 = vpop.permute.xlu0 %520
      %vm522 = vcmask 1039360
      %v523 = vsel %vm522, %v517, %v519
      %v524 = vsel %vm522, %v519, %v521
      %vm528 = vcmask 1043456
      %v529 = vsel %vm528, %v504, %v523
      %v530 = vsel %vm528, %v505, %v524
      %v531 = vsel %vm528, %v506, %v521
      %535 = vrot.lane.b32.xlu0 %v529, 17
      %v536 = vpop.permute.xlu0 %535
      %537 = vrot.lane.b32.xlu0 %v530, 17
      %v538 = vpop.permute.xlu0 %537
      %539 = vrot.lane.b32.xlu0 %v531, 17
      %v540 = vpop.permute.xlu0 %539
      %vm541 = vcmask 138240
      %v542 = vsel %vm541, %v536, %v538
      %v543 = vsel %vm541, %v538, %v540
      %546 = vst [vmem:[#allocation4] sm:$0xff] %v542
      %547 = vst [vmem:[#allocation4 + $0x8] sm:$0xff] %v543
      %v548 = vld [vmem:[#allocation3 + $0x40] sm:$0xf]
      %v549 = vld [vmem:[#allocation3 + $0x48] sm:$0xf]
      %v550 = vld [vmem:[#allocation3 + $0x50] sm:$0xf]
      %v551 = vld [vmem:[#allocation3 + $0x20] sm:$0xf]
      %v552 = vld [vmem:[#allocation3 + $0x28] sm:$0xf]
      %v553 = vld [vmem:[#allocation3 + $0x30] sm:$0xf]
      %v557 = vrot.slane %v551, 4
      %v558 = vrot.slane %v552, 4
      %v559 = vrot.slane %v553, 4
      %560 = vrot.lane.b32.xlu0 %v557, 114
      %v561 = vpop.permute.xlu0 %560
      %562 = vrot.lane.b32.xlu0 %v558, 114
      %v563 = vpop.permute.xlu0 %562
      %564 = vrot.lane.b32.xlu0 %v559, 114
      %v565 = vpop.permute.xlu0 %564
      %vm566 = vcmask 932864
      %v567 = vsel %vm566, %v561, %v563
      %v568 = vsel %vm566, %v563, %v565
      %v572 = vsel %vm528, %v548, %v567
      %v573 = vsel %vm528, %v549, %v568
      %v574 = vsel %vm528, %v550, %v565
      %578 = vrot.lane.b32.xlu0 %v572, 15
      %v579 = vpop.permute.xlu0 %578
      %580 = vrot.lane.b32.xlu0 %v573, 15
      %v581 = vpop.permute.xlu0 %580
      %582 = vrot.lane.b32.xlu0 %v574, 15
      %v583 = vpop.permute.xlu0 %582
      %vm584 = vcmask 121856
      %v585 = vsel %vm584, %v579, %v581
      %v586 = vsel %vm584, %v581, %v583
      %589 = vst [vmem:[#allocation4 + $0x10] sm:$0xff] %v585
      %590 = vst [vmem:[#allocation4 + $0x18] sm:$0xff] %v586
      %v591 = vld [vmem:[#allocation2 + $0x8] sm:$0xf]
      %v592 = vld [vmem:[#allocation2 + $0x10] sm:$0xf]
      %v593 = vld [vmem:[#allocation3 + $0x48] sm:$0xf]
      %v594 = vld [vmem:[#allocation3 + $0x50] sm:$0xf]
      %v595 = vld [vmem:[#allocation3 + $0x58] sm:$0xf]
      %v599 = vrot.slane %v593, 4
      %v600 = vrot.slane %v594, 4
      %v601 = vrot.slane %v595, 4
      %602 = vrot.lane.b32.xlu0 %v599, 127
      %v603 = vpop.permute.xlu0 %602
      %604 = vrot.lane.b32.xlu0 %v600, 127
      %v605 = vpop.permute.xlu0 %604
      %606 = vrot.lane.b32.xlu0 %v601, 127
      %v607 = vpop.permute.xlu0 %606
      %v608 = vsel %vm522, %v603, %v605
      %v609 = vsel %vm522, %v605, %v607
      %v612 = vsel %vm528, %v591, %v608
      %v613 = vsel %vm528, %v592, %v609
      %614 = vst [vmem:[#allocation4 + $0x20] sm:$0xff] %v612
      %615 = vst [vmem:[#allocation4 + $0x28] sm:$0xff] %v613
      %v616 = vld [vmem:[#allocation3 + $0x28] sm:$0xf]
      %v617 = vld [vmem:[#allocation3 + $0x30] sm:$0xf]
      %v618 = vld [vmem:[#allocation3 + $0x38] sm:$0xf]
      %v619 = vld [vmem:[#allocation2 + $0x8] sm:$0xf]
      %v620 = vld [vmem:[#allocation2 + $0x10] sm:$0xf]
      %v621 = vld [vmem:[#allocation2 + $0x18] sm:$0xf]
      %v625 = vrot.slane %v619, 4
      %v626 = vrot.slane %v620, 4
      %v627 = vrot.slane %v621, 4
      %628 = vrot.lane.b32.xlu0 %v625, 127
      %v629 = vpop.permute.xlu0 %628
      %630 = vrot.lane.b32.xlu0 %v626, 127
      %v631 = vpop.permute.xlu0 %630
      %632 = vrot.lane.b32.xlu0 %v627, 127
      %v633 = vpop.permute.xlu0 %632
      %v634 = vsel %vm522, %v629, %v631
      %v635 = vsel %vm522, %v631, %v633
      %v639 = vsel %vm528, %v616, %v634
      %v640 = vsel %vm528, %v617, %v635
      %v641 = vsel %vm528, %v618, %v633
      %645 = vrot.lane.b32.xlu0 %v639, 113
      %v646 = vpop.permute.xlu0 %645
      %647 = vrot.lane.b32.xlu0 %v640, 113
      %v648 = vpop.permute.xlu0 %647
      %649 = vrot.lane.b32.xlu0 %v641, 113
      %v650 = vpop.permute.xlu0 %649
      %vm651 = vcmask 924672
      %v652 = vsel %vm651, %v646, %v648
      %v653 = vsel %vm651, %v648, %v650
      %656 = vst [vmem:[#allocation4 + $0x30] sm:$0xff] %v652
      %657 = vst [vmem:[#allocation4 + $0x38] sm:$0xff] %v653
      %v658 = vld [vmem:[#allocation3 + $0x48] sm:$0xf]
      %v659 = vld [vmem:[#allocation3 + $0x50] sm:$0xf]
      %v660 = vld [vmem:[#allocation3 + $0x58] sm:$0xf]
      %v661 = vld [vmem:[#allocation3] sm:$0xf0]
      %v662 = vld [vmem:[#allocation3 + $0x8] sm:$0xf0]
      %v663 = vld [vmem:[#allocation3 + $0x10] sm:$0xf0]
      %667 = vrot.lane.b32.xlu0 %v661, 51
      %v668 = vpop.permute.xlu0 %667
      %669 = vrot.lane.b32.xlu0 %v662, 51
      %v670 = vpop.permute.xlu0 %669
      %671 = vrot.lane.b32.xlu0 %v663, 51
      %v672 = vpop.permute.xlu0 %671
      %vm673 = vcmask 416768
      %v674 = vsel %vm673, %v668, %v670
      %v675 = vsel %vm673, %v670, %v672
      %v679 = vsel %vm528, %v658, %v674
      %v680 = vsel %vm528, %v659, %v675
      %v681 = vsel %vm528, %v660, %v672
      %685 = vrot.lane.b32.xlu0 %v679, 111
      %v686 = vpop.permute.xlu0 %685
      %687 = vrot.lane.b32.xlu0 %v680, 111
      %v688 = vpop.permute.xlu0 %687
      %689 = vrot.lane.b32.xlu0 %v681, 111
      %v690 = vpop.permute.xlu0 %689
      %vm691 = vcmask 908288
      %v692 = vsel %vm691, %v686, %v688
      %v693 = vsel %vm691, %v688, %v690
      %696 = vst [vmem:[#allocation4 + $0x40] sm:$0xff] %v692
      %697 = vst [vmem:[#allocation4 + $0x48] sm:$0xff] %v693
      %v698 = vld [vmem:[#allocation3 + $0x20] sm:$0xf0]
      %v699 = vld [vmem:[#allocation3 + $0x28] sm:$0xf0]
      %v700 = vld [vmem:[#allocation3 + $0x30] sm:$0xf0]
      %v701 = vld [vmem:[#allocation2] sm:$0xf0]
      %v702 = vld [vmem:[#allocation2 + $0x8] sm:$0xf0]
      %v703 = vld [vmem:[#allocation2 + $0x10] sm:$0xf0]
      %v707 = vrot.slane %v698, 4
      %v708 = vrot.slane %v699, 4
      %v709 = vrot.slane %v700, 4
      %716 = vrot.lane.b32.xlu0 %v701, 127
      %v717 = vpop.permute.xlu0 %716
      %718 = vrot.lane.b32.xlu0 %v702, 127
      %v719 = vpop.permute.xlu0 %718
      %720 = vrot.lane.b32.xlu0 %v703, 127
      %v721 = vpop.permute.xlu0 %720
      %v722 = vsel %vm522, %v717, %v719
      %v723 = vsel %vm522, %v719, %v721
      %v727 = vsel %vm528, %v707, %v722
      %v728 = vsel %vm528, %v708, %v723
      %v729 = vsel %vm528, %v709, %v721
      %733 = vrot.lane.b32.xlu0 %v727, 33
      %v734 = vpop.permute.xlu0 %733
      %735 = vrot.lane.b32.xlu0 %v728, 33
      %v736 = vpop.permute.xlu0 %735
      %737 = vrot.lane.b32.xlu0 %v729, 33
      %v738 = vpop.permute.xlu0 %737
      %vm739 = vcmask 269312
      %v740 = vsel %vm739, %v734, %v736
      %v741 = vsel %vm739, %v736, %v738
      %744 = vst [vmem:[#allocation4 + $0x50] sm:$0xff] %v740
      %745 = vst [vmem:[#allocation4 + $0x58] sm:$0xff] %v741
      %v746 = vld [vmem:[#allocation3 + $0x40] sm:$0xf0]
      %v747 = vld [vmem:[#allocation3 + $0x48] sm:$0xf0]
      %v748 = vld [vmem:[#allocation3 + $0x50] sm:$0xf0]
      %v749 = vld [vmem:[#allocation3 + $0x60] sm:$0xf0]
      %v750 = vld [vmem:[#allocation3 + $0x68] sm:$0xf0]
      %v751 = vld [vmem:[#allocation3 + $0x70] sm:$0xf0]
      %v755 = vrot.slane %v746, 4
      %v756 = vrot.slane %v747, 4
      %v757 = vrot.slane %v748, 4
      %764 = vrot.lane.b32.xlu0 %v749, 127
      %v765 = vpop.permute.xlu0 %764
      %766 = vrot.lane.b32.xlu0 %v750, 127
      %v767 = vpop.permute.xlu0 %766
      %768 = vrot.lane.b32.xlu0 %v751, 127
      %v769 = vpop.permute.xlu0 %768
      %v770 = vsel %vm522, %v765, %v767
      %v771 = vsel %vm522, %v767, %v769
      %v775 = vsel %vm528, %v755, %v770
      %v776 = vsel %vm528, %v756, %v771
      %v777 = vsel %vm528, %v757, %v769
      %781 = vrot.lane.b32.xlu0 %v775, 31
      %v782 = vpop.permute.xlu0 %781
      %783 = vrot.lane.b32.xlu0 %v776, 31
      %v784 = vpop.permute.xlu0 %783
      %785 = vrot.lane.b32.xlu0 %v777, 31
      %v786 = vpop.permute.xlu0 %785
      %vm787 = vcmask 252928
      %v788 = vsel %vm787, %v782, %v784
      %v789 = vsel %vm787, %v784, %v786
      %792 = vst [vmem:[#allocation4 + $0x60] sm:$0xff] %v788
      %793 = vst [vmem:[#allocation4 + $0x68] sm:$0xff] %v789
      %v794 = vld [vmem:[#allocation3] sm:$0xf0]
      %v795 = vld [vmem:[#allocation3 + $0x8] sm:$0xf0]
      %v796 = vld [vmem:[#allocation3 + $0x10] sm:$0xf0]
      %v797 = vld [vmem:[#allocation3 + $0x20] sm:$0xf0]
      %v798 = vld [vmem:[#allocation3 + $0x28] sm:$0xf0]
      %v799 = vld [vmem:[#allocation3 + $0x30] sm:$0xf0]
      %v803 = vrot.slane %v794, 4
      %v804 = vrot.slane %v795, 4
      %v805 = vrot.slane %v796, 4
      %812 = vrot.lane.b32.xlu0 %v797, 127
      %v813 = vpop.permute.xlu0 %812
      %814 = vrot.lane.b32.xlu0 %v798, 127
      %v815 = vpop.permute.xlu0 %814
      %816 = vrot.lane.b32.xlu0 %v799, 127
      %v817 = vpop.permute.xlu0 %816
      %v818 = vsel %vm522, %v813, %v815
      %v819 = vsel %vm522, %v815, %v817
      %v823 = vsel %vm528, %v803, %v818
      %v824 = vsel %vm528, %v804, %v819
      %v825 = vsel %vm528, %v805, %v817
      %829 = vrot.lane.b32.xlu0 %v823, 18
      %v830 = vpop.permute.xlu0 %829
      %831 = vrot.lane.b32.xlu0 %v824, 18
      %v832 = vpop.permute.xlu0 %831
      %833 = vrot.lane.b32.xlu0 %v825, 18
      %v834 = vpop.permute.xlu0 %833
      %vm835 = vcmask 146432
      %v836 = vsel %vm835, %v830, %v832
      %v837 = vsel %vm835, %v832, %v834
      %840 = vst [vmem:[#allocation4 + $0x70] sm:$0xff] %v836
      %841 = vst [vmem:[#allocation4 + $0x78] sm:$0xff] %v837
      %v842 = vld [vmem:[#allocation2] sm:$0xf0]
      %v843 = vld [vmem:[#allocation2 + $0x8] sm:$0xf0]
      %v844 = vld [vmem:[#allocation2 + $0x10] sm:$0xf0]
      %v845 = vld [vmem:[#allocation3 + $0x40] sm:$0xf0]
      %v846 = vld [vmem:[#allocation3 + $0x48] sm:$0xf0]
      %v847 = vld [vmem:[#allocation3 + $0x50] sm:$0xf0]
      %v851 = vrot.slane %v842, 4
      %v852 = vrot.slane %v843, 4
      %v853 = vrot.slane %v844, 4
      %860 = vrot.lane.b32.xlu0 %v845, 127
      %v861 = vpop.permute.xlu0 %860
      %862 = vrot.lane.b32.xlu0 %v846, 127
      %v863 = vpop.permute.xlu0 %862
      %864 = vrot.lane.b32.xlu0 %v847, 127
      %v865 = vpop.permute.xlu0 %864
      %v866 = vsel %vm522, %v861, %v863
      %v867 = vsel %vm522, %v863, %v865
      %v871 = vsel %vm528, %v851, %v866
      %v872 = vsel %vm528, %v852, %v867
      %v873 = vsel %vm528, %v853, %v865
      %877 = vrot.lane.b32.xlu0 %v871, 16
      %v878 = vpop.permute.xlu0 %877
      %879 = vrot.lane.b32.xlu0 %v872, 16
      %v880 = vpop.permute.xlu0 %879
      %881 = vrot.lane.b32.xlu0 %v873, 16
      %v882 = vpop.permute.xlu0 %881
      %vm883 = vcmask 130048
      %v884 = vsel %vm883, %v878, %v880
      %v885 = vsel %vm883, %v880, %v882
      %888 = vst [vmem:[#allocation4 + $0x80] sm:$0xff] %v884
      %889 = vst [vmem:[#allocation4 + $0x88] sm:$0xff] %v885
      %v890 = vld [vmem:[#allocation3 + $0x60] sm:$0xf0]
      %v891 = vld [vmem:[#allocation3 + $0x68] sm:$0xf0]
      %v892 = vld [vmem:[#allocation3 + $0x70] sm:$0xf0]
      %v893 = vld [vmem:[#allocation3] sm:$0xf0]
      %v894 = vld [vmem:[#allocation3 + $0x8] sm:$0xf0]
      %v895 = vld [vmem:[#allocation3 + $0x10] sm:$0xf0]
      %v899 = vrot.slane %v890, 4
      %v900 = vrot.slane %v891, 4
      %v901 = vrot.slane %v892, 4
      %908 = vrot.lane.b32.xlu0 %v893, 116
      %v909 = vpop.permute.xlu0 %908
      %910 = vrot.lane.b32.xlu0 %v894, 116
      %v911 = vpop.permute.xlu0 %910
      %912 = vrot.lane.b32.xlu0 %v895, 116
      %v913 = vpop.permute.xlu0 %912
      %vm914 = vcmask 949248
      %v915 = vsel %vm914, %v909, %v911
      %v916 = vsel %vm914, %v911, %v913
      %v920 = vsel %vm528, %v899, %v915
      %v921 = vsel %vm528, %v900, %v916
      %v922 = vsel %vm528, %v901, %v913
      %926 = vrot.lane.b32.xlu0 %v920, 14
      %v927 = vpop.permute.xlu0 %926
      %928 = vrot.lane.b32.xlu0 %v921, 14
      %v929 = vpop.permute.xlu0 %928
      %930 = vrot.lane.b32.xlu0 %v922, 14
      %v931 = vpop.permute.xlu0 %930
      %vm932 = vcmask 113664
      %v933 = vsel %vm932, %v927, %v929
      %v934 = vsel %vm932, %v929, %v931
      %937 = vst [vmem:[#allocation4 + $0x90] sm:$0xff] %v933
      %938 = vst [vmem:[#allocation4 + $0x98] sm:$0xff] %v934
      %v939 = vld [vmem:[#allocation3 + $0x20] sm:$0xf0]
      %v940 = vld [vmem:[#allocation3 + $0x28] sm:$0xf0]
      %v941 = vld [vmem:[#allocation3 + $0x30] sm:$0xf0]
      %v942 = vld [vmem:[#allocation2 + $0x8] sm:$0xf0]
      %v943 = vld [vmem:[#allocation2 + $0x10] sm:$0xf0]
      %v947 = vrot.slane %v939, 4
      %v948 = vrot.slane %v940, 4
      %v949 = vrot.slane %v941, 4
      %955 = vrot.lane.b32.xlu0 %v942, 127
      %v956 = vpop.permute.xlu0 %955
      %957 = vrot.lane.b32.xlu0 %v943, 127
      %v958 = vpop.permute.xlu0 %957
      %v959 = vsel %vm522, %v956, %v958
      %v963 = vsel %vm528, %v947, %v956
      %v964 = vsel %vm528, %v948, %v959
      %v965 = vsel %vm528, %v949, %v958
      %969 = vrot.lane.b32.xlu0 %v963, 1
      %v970 = vpop.permute.xlu0 %969
      %971 = vrot.lane.b32.xlu0 %v964, 1
      %v972 = vpop.permute.xlu0 %971
      %973 = vrot.lane.b32.xlu0 %v965, 1
      %v974 = vpop.permute.xlu0 %973
      %vm975 = vcmask 7168
      %v976 = vsel %vm975, %v970, %v972
      %v977 = vsel %vm975, %v972, %v974
      %980 = vst [vmem:[#allocation4 + $0xa0] sm:$0xff] %v976
      %981 = vst [vmem:[#allocation4 + $0xa8] sm:$0xff] %v977
      %v982 = vld [vmem:[#allocation3 + $0x48] sm:$0xf0]
      %v983 = vld [vmem:[#allocation3 + $0x50] sm:$0xf0]
      %v984 = vld [vmem:[#allocation3 + $0x58] sm:$0xf0]
      %v985 = vld [vmem:[#allocation3 + $0x68] sm:$0xf0]
      %v986 = vld [vmem:[#allocation3 + $0x70] sm:$0xf0]
      %v987 = vld [vmem:[#allocation3 + $0x78] sm:$0xf0]
      %v991 = vrot.slane %v982, 4
      %v992 = vrot.slane %v983, 4
      %v993 = vrot.slane %v984, 4
      %1000 = vrot.lane.b32.xlu0 %v985, 127
      %v1001 = vpop.permute.xlu0 %1000
      %1002 = vrot.lane.b32.xlu0 %v986, 127
      %v1003 = vpop.permute.xlu0 %1002
      %1004 = vrot.lane.b32.xlu0 %v987, 127
      %v1005 = vpop.permute.xlu0 %1004
      %v1006 = vsel %vm522, %v1001, %v1003
      %v1007 = vsel %vm522, %v1003, %v1005
      %v1011 = vsel %vm528, %v991, %v1006
      %v1012 = vsel %vm528, %v992, %v1007
      %v1013 = vsel %vm528, %v993, %v1005
      %1017 = vrot.lane.b32.xlu0 %v1011, 127
      %v1018 = vpop.permute.xlu0 %1017
      %1019 = vrot.lane.b32.xlu0 %v1012, 127
      %v1020 = vpop.permute.xlu0 %1019
      %1021 = vrot.lane.b32.xlu0 %v1013, 127
      %v1022 = vpop.permute.xlu0 %1021
      %v1023 = vsel %vm522, %v1018, %v1020
      %v1024 = vsel %vm522, %v1020, %v1022
      %1027 = vst [vmem:[#allocation4 + $0xb0] sm:$0xff] %v1023
      %1028 = vst [vmem:[#allocation4 + $0xb8] sm:$0xff] %v1024
      %v1029 = vld [vmem:[#allocation3 + $0x8] sm:$0xf0]
      %v1030 = vld [vmem:[#allocation3 + $0x10] sm:$0xf0]
      %v1031 = vld [vmem:[#allocation3 + $0x18] sm:$0xf0]
      %v1032 = vld [vmem:[#allocation3 + $0x28] sm:$0xf0]
      %v1033 = vld [vmem:[#allocation3 + $0x30] sm:$0xf0]
      %v1034 = vld [vmem:[#allocation3 + $0x38] sm:$0xf0]
      %v1038 = vrot.slane %v1029, 4
      %v1039 = vrot.slane %v1030, 4
      %v1040 = vrot.slane %v1031, 4
      %1047 = vrot.lane.b32.xlu0 %v1032, 127
      %v1048 = vpop.permute.xlu0 %1047
      %1049 = vrot.lane.b32.xlu0 %v1033, 127
      %v1050 = vpop.permute.xlu0 %1049
      %1051 = vrot.lane.b32.xlu0 %v1034, 127
      %v1052 = vpop.permute.xlu0 %1051
      %v1053 = vsel %vm522, %v1048, %v1050
      %v1054 = vsel %vm522, %v1050, %v1052
      %v1058 = vsel %vm528, %v1038, %v1053
      %v1059 = vsel %vm528, %v1039, %v1054
      %v1060 = vsel %vm528, %v1040, %v1052
      %1064 = vrot.lane.b32.xlu0 %v1058, 114
      %v1065 = vpop.permute.xlu0 %1064
      %1066 = vrot.lane.b32.xlu0 %v1059, 114
      %v1067 = vpop.permute.xlu0 %1066
      %1068 = vrot.lane.b32.xlu0 %v1060, 114
      %v1069 = vpop.permute.xlu0 %1068
      %v1070 = vsel %vm566, %v1065, %v1067
      %v1071 = vsel %vm566, %v1067, %v1069
      %1074 = vst [vmem:[#allocation4 + $0xc0] sm:$0xff] %v1070
      %1075 = vst [vmem:[#allocation4 + $0xc8] sm:$0xff] %v1071
      %v1076 = vld [vmem:[#allocation2 + $0x8] sm:$0xf0]
      %v1077 = vld [vmem:[#allocation2 + $0x10] sm:$0xf0]
      %v1078 = vld [vmem:[#allocation2 + $0x18] sm:$0xf0]
      %v1079 = vld [vmem:[#allocation3 + $0x48] sm:$0xf0]
      %v1080 = vld [vmem:[#allocation3 + $0x50] sm:$0xf0]
      %v1081 = vld [vmem:[#allocation3 + $0x58] sm:$0xf0]
      %v1085 = vrot.slane %v1076, 4
      %v1086 = vrot.slane %v1077, 4
      %v1087 = vrot.slane %v1078, 4
      %1094 = vrot.lane.b32.xlu0 %v1079, 127
      %v1095 = vpop.permute.xlu0 %1094
      %1096 = vrot.lane.b32.xlu0 %v1080, 127
      %v1097 = vpop.permute.xlu0 %1096
      %1098 = vrot.lane.b32.xlu0 %v1081, 127
      %v1099 = vpop.permute.xlu0 %1098
      %v1100 = vsel %vm522, %v1095, %v1097
      %v1101 = vsel %vm522, %v1097, %v1099
      %v1105 = vsel %vm528, %v1085, %v1100
      %v1106 = vsel %vm528, %v1086, %v1101
      %v1107 = vsel %vm528, %v1087, %v1099
      %1111 = vrot.lane.b32.xlu0 %v1105, 112
      %v1112 = vpop.permute.xlu0 %1111
      %1113 = vrot.lane.b32.xlu0 %v1106, 112
      %v1114 = vpop.permute.xlu0 %1113
      %1115 = vrot.lane.b32.xlu0 %v1107, 112
      %v1116 = vpop.permute.xlu0 %1115
      %vm1117 = vcmask 916480
      %v1118 = vsel %vm1117, %v1112, %v1114
      %v1119 = vsel %vm1117, %v1114, %v1116
      %1122 = vst [vmem:[#allocation4 + $0xd0] sm:$0xff] %v1118
      %1123 = vst [vmem:[#allocation4 + $0xd8] sm:$0xff] %v1119
      %v1124 = vld [vmem:[#allocation3 + $0x68] sm:$0xf0]
      %v1125 = vld [vmem:[#allocation3 + $0x70] sm:$0xf0]
      %v1126 = vld [vmem:[#allocation3 + $0x78] sm:$0xf0]
      %v1127 = vld [vmem:[#allocation3 + $0x8] sm:$0xf0]
      %v1128 = vld [vmem:[#allocation3 + $0x10] sm:$0xf0]
      %v1129 = vld [vmem:[#allocation3 + $0x18] sm:$0xf0]
      %v1133 = vrot.slane %v1124, 4
      %v1134 = vrot.slane %v1125, 4
      %v1135 = vrot.slane %v1126, 4
      %1142 = vrot.lane.b32.xlu0 %v1127, 116
      %v1143 = vpop.permute.xlu0 %1142
      %1144 = vrot.lane.b32.xlu0 %v1128, 116
      %v1145 = vpop.permute.xlu0 %1144
      %1146 = vrot.lane.b32.xlu0 %v1129, 116
      %v1147 = vpop.permute.xlu0 %1146
      %v1148 = vsel %vm914, %v1143, %v1145
      %v1149 = vsel %vm914, %v1145, %v1147
      %v1153 = vsel %vm528, %v1133, %v1148
      %v1154 = vsel %vm528, %v1134, %v1149
      %v1155 = vsel %vm528, %v1135, %v1147
      %1159 = vrot.lane.b32.xlu0 %v1153, 110
      %v1160 = vpop.permute.xlu0 %1159
      %1161 = vrot.lane.b32.xlu0 %v1154, 110
      %v1162 = vpop.permute.xlu0 %1161
      %1163 = vrot.lane.b32.xlu0 %v1155, 110
      %v1164 = vpop.permute.xlu0 %1163
      %vm1165 = vcmask 900096
      %v1166 = vsel %vm1165, %v1160, %v1162
      %v1167 = vsel %vm1165, %v1162, %v1164
      %1170 = vst [vmem:[#allocation4 + $0xe0] sm:$0xff] %v1166
      %1171 = vst [vmem:[#allocation4 + $0xe8] sm:$0xff] %v1167
      %v1172 = vld [vmem:[#allocation3 + $0x28] sm:$0xf0]
      %v1173 = vld [vmem:[#allocation3 + $0x30] sm:$0xf0]
      %v1174 = vld [vmem:[#allocation3 + $0x38] sm:$0xf0]
      %v1175 = vld [vmem:[#allocation2 + $0x8] sm:$0xf0]
      %v1176 = vld [vmem:[#allocation2 + $0x10] sm:$0xf0]
      %v1177 = vld [vmem:[#allocation2 + $0x18] sm:$0xf0]
      %v1181 = vrot.slane %v1172, 4
      %v1182 = vrot.slane %v1173, 4
      %v1183 = vrot.slane %v1174, 4
      %1190 = vrot.lane.b32.xlu0 %v1175, 127
      %v1191 = vpop.permute.xlu0 %1190
      %1192 = vrot.lane.b32.xlu0 %v1176, 127
      %v1193 = vpop.permute.xlu0 %1192
      %1194 = vrot.lane.b32.xlu0 %v1177, 127
      %v1195 = vpop.permute.xlu0 %1194
      %v1196 = vsel %vm522, %v1191, %v1193
      %v1197 = vsel %vm522, %v1193, %v1195
      %v1201 = vsel %vm528, %v1181, %v1196
      %v1202 = vsel %vm528, %v1182, %v1197
      %v1203 = vsel %vm528, %v1183, %v1195
      %1207 = vrot.lane.b32.xlu0 %v1201, 97
      %v1208 = vpop.permute.xlu0 %1207
      %1209 = vrot.lane.b32.xlu0 %v1202, 97
      %v1210 = vpop.permute.xlu0 %1209
      %1211 = vrot.lane.b32.xlu0 %v1203, 97
      %v1212 = vpop.permute.xlu0 %1211
      %vm1213 = vcmask 793600
      %v1214 = vsel %vm1213, %v1208, %v1210
      %v1215 = vsel %vm1213, %v1210, %v1212
      %1218 = vst [vmem:[#allocation4 + $0xf0] sm:$0xff] %v1214
      %1219 = vst [vmem:[#allocation4 + $0xf8] sm:$0xff] %v1215
      %v1220 = vld [vmem:[#allocation3 + $0x48] sm:$0xf0]
      %v1221 = vld [vmem:[#allocation3 + $0x50] sm:$0xf0]
      %v1222 = vld [vmem:[#allocation3 + $0x58] sm:$0xf0]
      %v1223 = vld [vmem:[#allocation3 + $0x68] sm:$0xf0]
      %v1224 = vld [vmem:[#allocation3 + $0x70] sm:$0xf0]
      %v1225 = vld [vmem:[#allocation3 + $0x78] sm:$0xf0]
      %v1229 = vrot.slane %v1220, 4
      %v1230 = vrot.slane %v1221, 4
      %v1231 = vrot.slane %v1222, 4
      %1238 = vrot.lane.b32.xlu0 %v1223, 127
      %v1239 = vpop.permute.xlu0 %1238
      %1240 = vrot.lane.b32.xlu0 %v1224, 127
      %v1241 = vpop.permute.xlu0 %1240
      %1242 = vrot.lane.b32.xlu0 %v1225, 127
      %v1243 = vpop.permute.xlu0 %1242
      %v1244 = vsel %vm522, %v1239, %v1241
      %v1245 = vsel %vm522, %v1241, %v1243
      %v1249 = vsel %vm528, %v1229, %v1244
      %v1250 = vsel %vm528, %v1230, %v1245
      %v1251 = vsel %vm528, %v1231, %v1243
      %1255 = vrot.lane.b32.xlu0 %v1249, 95
      %v1256 = vpop.permute.xlu0 %1255
      %1257 = vrot.lane.b32.xlu0 %v1250, 95
      %v1258 = vpop.permute.xlu0 %1257
      %1259 = vrot.lane.b32.xlu0 %v1251, 95
      %v1260 = vpop.permute.xlu0 %1259
      %vm1261 = vcmask 777216
      %v1262 = vsel %vm1261, %v1256, %v1258
      %v1263 = vsel %vm1261, %v1258, %v1260
      %1266 = vst [vmem:[#allocation4 + $0x100] sm:$0xff] %v1262
      %1267 = vst [vmem:[#allocation4 + $0x108] sm:$0xff] %v1263
      %v1268 = vld [vmem:[%s1] sm:$0xff]
      %v1269 = vld [vmem:[%s1 + $0x8] sm:$0xff]
      %v1270 = vld [vmem:[#allocation4] sm:$0xff]
      %v1271 = vld [vmem:[#allocation4 + $0x8] sm:$0xff]
      %v1272 = vld [vmem:[#allocation4 + $0x10] sm:$0xff]
      %v1273 = vld [vmem:[#allocation4 + $0x18] sm:$0xff]
      %v1274 = vld [vmem:[#allocation4 + $0x20] sm:$0xff]
      %v1275 = vld [vmem:[#allocation4 + $0x28] sm:$0xff]
      %v1276 = vld [vmem:[#allocation4 + $0x30] sm:$0xff]
      %v1277 = vld [vmem:[#allocation4 + $0x38] sm:$0xff]
      %v1278 = vld [vmem:[#allocation4 + $0x40] sm:$0xff]
      %v1279 = vld [vmem:[#allocation4 + $0x48] sm:$0xff]
      %v1280 = vld [vmem:[#allocation4 + $0x50] sm:$0xff]
      %v1281 = vld [vmem:[#allocation4 + $0x58] sm:$0xff]
      %v1282 = vld [vmem:[#allocation4 + $0x60] sm:$0xff]
      %v1283 = vld [vmem:[#allocation4 + $0x68] sm:$0xff]
      %v1284 = vld [vmem:[#allocation4 + $0x70] sm:$0xff]
      %v1285 = vld [vmem:[#allocation4 + $0x78] sm:$0xff]
      %v1286 = vld [vmem:[#allocation4 + $0x80] sm:$0xff]
      %v1287 = vld [vmem:[#allocation4 + $0x88] sm:$0xff]
      %v1288 = vld [vmem:[#allocation4 + $0x90] sm:$0xff]
      %v1289 = vld [vmem:[#allocation4 + $0x98] sm:$0xff]
      %v1290 = vld [vmem:[#allocation4 + $0xa0] sm:$0xff]
      %v1291 = vld [vmem:[#allocation4 + $0xa8] sm:$0xff]
      %v1292 = vld [vmem:[#allocation4 + $0xb0] sm:$0xff]
      %v1293 = vld [vmem:[#allocation4 + $0xb8] sm:$0xff]
      %v1294 = vld [vmem:[#allocation4 + $0xc0] sm:$0xff]
      %v1295 = vld [vmem:[#allocation4 + $0xc8] sm:$0xff]
      %v1296 = vld [vmem:[#allocation4 + $0xd0] sm:$0xff]
      %v1297 = vld [vmem:[#allocation4 + $0xd8] sm:$0xff]
      %v1298 = vld [vmem:[#allocation4 + $0xe0] sm:$0xff]
      %v1299 = vld [vmem:[#allocation4 + $0xe8] sm:$0xff]
      %v1300 = vld [vmem:[#allocation4 + $0xf0] sm:$0xff]
      %v1301 = vld [vmem:[#allocation4 + $0xf8] sm:$0xff]
      %v1302 = vld [vmem:[#allocation4 + $0x100] sm:$0xff]
      %v1303 = vld [vmem:[#allocation4 + $0x108] sm:$0xff]
      %v1304 = vld [vmem:[#allocation4 + $0x110] sm:$0x1]
      %v1305 = vld [vmem:[#allocation4 + $0x118] sm:$0x1]
      %vm1306 = vcmask 72704
      %v1308 = vsel %vm1306, %v1269, 0
      %vm1310 = vcmask 1040384
      %v1312 = vsel %vm1310, %v1304, 0
      %v1315 = vsel %vm1310, %v1305, 0
      %1317 = vmatprep.subr.mxu0 %v1301
      %1318 = vmatpush1.msra.mxu0 %v1300
      %1319 = vmatprep.subr.mxu0 %v1299
      %1320 = vmatpush1.msra.mxu0 %v1298
      %1321 = vmatprep.subr.mxu0 %v1297
      %1322 = vmatpush1.msra.mxu0 %v1296
      %1323 = vmatprep.subr.mxu0 %v1295
      %1324 = vmatpush1.msra.mxu0 %v1294
      %1325 = vmatprep.subr.mxu0 %v1293
      %1326 = vmatpush1.msra.mxu0 %v1292
      %1327 = vmatprep.subr.mxu0 %v1291
      %1328 = vmatpush1.msra.mxu0 %v1290
      %1329 = vmatprep.subr.mxu0 %v1289
      %1330 = vmatpush1.msra.mxu0 %v1288
      %1331 = vmatprep.subr.mxu0 %v1287
      %1332 = vmatpush1.msra.mxu0 %v1286
      %1333 = vmatprep.subr.mxu0 %v1285
      %1334 = vmatpush1.msra.mxu0 %v1284
      %1335 = vmatprep.subr.mxu0 %v1283
      %1336 = vmatpush1.msra.mxu0 %v1282
      %1337 = vmatprep.subr.mxu0 %v1281
      %1338 = vmatpush1.msra.mxu0 %v1280
      %1339 = vmatprep.subr.mxu0 %v1279
      %1340 = vmatpush1.msra.mxu0 %v1278
      %1341 = vmatprep.subr.mxu0 %v1277
      %1342 = vmatpush1.msra.mxu0 %v1276
      %1343 = vmatprep.subr.mxu0 %v1275
      %1344 = vmatpush1.msra.mxu0 %v1274
      %1345 = vmatprep.subr.mxu0 %v1273
      %1346 = vmatpush1.msra.mxu0 %v1272
      %1347 = vmatprep.subr.mxu0 %v1271
      %1348 = vmatpush1.msra.mxu0 %v1270
      %1349 = vmatprep.subr.mxu0 0.0
      %1350 = vmatpush2.msra.mxu0 0.0
      %1351 = vmatprep.subr.mxu0 0.0
      %1352 = vmatpush2.msra.mxu0 0.0
      %1353 = vmatprep.subr.mxu0 0.0
      %1354 = vmatpush2.msra.mxu0 0.0
      %1355 = vmatprep.subr.mxu0 0.0
      %1356 = vmatpush2.msra.mxu0 0.0
      %1357 = vmatprep.subr.mxu0 0.0
      %1358 = vmatpush2.msra.mxu0 0.0
      %1359 = vmatprep.subr.mxu0 0.0
      %1360 = vmatpush2.msra.mxu0 0.0
      %1361 = vmatprep.subr.mxu0 0.0
      %1362 = vmatpush2.msra.mxu0 0.0
      %1363 = vmatprep.subr.mxu0 0.0
      %1364 = vmatpush2.msra.mxu0 0.0
      %1365 = vmatprep.subr.mxu0 0.0
      %1366 = vmatpush2.msra.mxu0 0.0
      %1367 = vmatprep.subr.mxu0 0.0
      %1368 = vmatpush2.msra.mxu0 0.0
      %1369 = vmatprep.subr.mxu0 0.0
      %1370 = vmatpush2.msra.mxu0 0.0
      %1371 = vmatprep.subr.mxu0 0.0
      %1372 = vmatpush2.msra.mxu0 0.0
      %1373 = vmatprep.subr.mxu0 0.0
      %1374 = vmatpush2.msra.mxu0 0.0
      %1375 = vmatprep.subr.mxu0 0.0
      %1376 = vmatpush2.msra.mxu0 0.0
      %1377 = vmatprep.subr.mxu0 %v1315
      %1378 = vmatpush2.msra.mxu0 %v1312
      %1379 = vmatprep.subr.mxu0 %v1303
      %1380 = vmatpush2.msra.mxu0 %v1302
      %1381 = vmatprep.mubr.f32.mxu0 %v1308
      %1382 = vmatmul.mubr.f32.gmra.mxu0 %v1268
      %v1383 = vpop.f32.mrf.mxu0
      %v1384 = vadd.f32 0.0, %v1383
      %v1385 = vpop.f32.mrf.mxu0
      %v1386 = vadd.f32 0.0, %v1385
      %1387 = vdwg.mxu0
      %1388 = vst [vmem:[%s143] sm:$0xff] %v1384
      %1389 = vst [vmem:[%s143 + $0x8] sm:$0xff] %v1386
      %p1390 = scmp.lt.s32.totalorder %s13, 1
      %s1391 = scalar_select %p1390, %s13, 1
      %s1392 = smul.addr %s1391, 2
      %s1393 = smul.addr %s1392, 8
      %s1394 = scalar_lea.vmem %s2, %s1393
      // Predicated region
      $region29: #{mixconv2d_forward.1} parent=27 // pred_check
        %p1395 = pneg %p78
      $region30: #{mixconv2d_forward.1} parent=27 // pred_check_branch
        %1397 = sbr.rel (%p1395) target = $region32
      $region31: #{mixconv2d_forward.1} parent=27 // pred_region
        _
      $region32: #{mixconv2d_forward.1} parent=27 // pred_fallthru
        _
    $region28: #{mixconv2d_forward.1} parent=5 // pred_fallthru
      _
    %p1398 = scmp.le.s32.totalorder 2, %s8
    // Predicated region
    $region33: #{mixconv2d_forward.1} parent=5 // pred_check
      %p1399 = pneg %p1398
    $region34: #{mixconv2d_forward.1} parent=5 // pred_check_branch
      %1401 = sbr.rel (%p1399) target = $region36
    $region35: #{mixconv2d_forward.1} parent=5 // pred_region
      %s1402 = ssub.s32 %s8, 2
      // Predicated region
      $region37: #{mixconv2d_forward.1} parent=35 // pred_check
        %p1403 = pneg %p84
      $region38: #{mixconv2d_forward.1} parent=35 // pred_check_branch
        %1405 = sbr.rel (%p1403) target = $region40
      $region39: #{mixconv2d_forward.1} parent=35 // pred_region
        %p1406 = scmp.lt.s32.totalorder %s14, 1
        %s1407 = scalar_select %p1406, %s14, 1
        %s1408 = smul.addr %s1407, 2
        %s1409 = smul.addr %s1408, 8
        %s1410 = scalar_lea.vmem %s2, %s1409
      $region40: #{mixconv2d_forward.1} parent=35 // pred_fallthru
        _
    $region36: #{mixconv2d_forward.1} parent=5 // pred_fallthru
      _
  $region6: #{mixconv2d_forward.1} parent=0 // loop_footer
    %s12 = sadd.s32 1, %s8
  $region7: #{mixconv2d_forward.1} parent=0 // loop_footer_branch
    %7 = sbr.rel target = $region3
  $region8: #{mixconv2d_forward.1} parent=0 // loop_exit
    _

</llo_original>
